<compile_context>
chip_gen: v7x
topology: tpu7x:2x2x1
jax: 0.10.0
libtpu: 0.0.40
codegen_flags: <defaults>
</compile_context>

<pallas_src>
import jax
import jax.numpy as jnp
from jax.experimental import pallas as pl
from jax.experimental.pallas import tpu as pltpu

POSE = 7
DOF = 4
HIDDEN_DIMS = [400, 300, 200, 100, 50]  # iknet default input_dims

LANE = 128
SUBLANE = 8
IN_PAD = 8            # input features padded 7 -> 8 (sublane-aligned K for layer 0)
MAX_TILE_B = 1024     # large tile amortizes per-grid-step overhead
MIN_SPLIT_BATCH = 512  # at/above this, force grid >= 2 so v7x's 2 TCs both get work


def _round_up(n, m):
    return ((n + m - 1) // m) * m


def _choose_tile(batch):
    """Batch tile: big enough to amortize step overhead, >=2 steps for large batch."""
    if batch > MAX_TILE_B:
        return MAX_TILE_B
    if batch >= MIN_SPLIT_BATCH:
        # Split into two tiles so ("parallel",) shards across both v7x TensorCores.
        return _round_up((batch + 1) // 2, SUBLANE)
    return _round_up(max(batch, 1), SUBLANE)


def iknet_kernel(x_ref,
                 w0_ref, b0_ref, w1_ref, b1_ref, w2_ref, b2_ref,
                 w3_ref, b3_ref, w4_ref, b4_ref, w5_ref, b5_ref,
                 o_ref):
    """One batch tile: fused 6-layer MLP. bf16 MXU matmuls, f32 accumulation.

    Padded weight rows/cols, padded bias lanes and the padded input column are all
    zero, so padded lanes stay zero through bias-add + ReLU and never contaminate
    the real outputs.
    """
    def layer(h, w_ref, b_ref, relu):
        acc = jnp.dot(h.astype(jnp.bfloat16), w_ref[...],
                      preferred_element_type=jnp.float32) + b_ref[...]
        return jnp.maximum(acc, 0.0) if relu else acc

    h = x_ref[...]                        # (tile_b, 8) f32, col 7 is zero padding
    h = layer(h, w0_ref, b0_ref, True)    # Linear + ReLU (+ Dropout == identity, eval)
    h = layer(h, w1_ref, b1_ref, True)
    h = layer(h, w2_ref, b2_ref, True)
    h = layer(h, w3_ref, b3_ref, True)
    h = layer(h, w4_ref, b4_ref, True)
    o_ref[...] = layer(h, w5_ref, b5_ref, False).astype(o_ref.dtype)  # final Linear


def init_params(key, dtype=jnp.float32):
    """Deterministic parameter init (PyTorch-style uniform fan-in bounds)."""
    dims = [POSE] + HIDDEN_DIMS + [DOF]
    params = []
    for i in range(len(dims) - 1):
        fan_in, fan_out = dims[i], dims[i + 1]
        key, kw, kb = jax.random.split(key, 3)
        bound = 1.0 / jnp.sqrt(jnp.array(fan_in, dtype))
        # Weight stored as (in, out) so the kernel does x @ W directly.
        w = jax.random.uniform(kw, (fan_in, fan_out), dtype, -bound, bound)
        b = jax.random.uniform(kb, (fan_out,), dtype, -bound, bound)
        params.append((w, b))
    return params


def _pad_params(params):
    """Zero-pad feature dims (first layer K -> 8, everything else -> multiples of 128).

    Weights in bf16 (native MXU input, halves weight DMA bytes), biases stay f32.
    """
    flat = []
    for li, (w, b) in enumerate(params):
        fi, fo = w.shape
        fi_p = IN_PAD if li == 0 else _round_up(fi, LANE)
        fo_p = _round_up(fo, LANE)
        w_p = jnp.zeros((fi_p, fo_p), jnp.float32).at[:fi, :fo].set(w)
        flat.append(w_p.astype(jnp.bfloat16))
        b_p = jnp.zeros((1, fo_p), jnp.float32).at[0, :fo].set(b)
        flat.append(b_p)
    return tuple(flat)


@jax.jit
def iknet_forward(x, params_flat):
    """x: (batch, 7) float32 -> (batch, 4) float32."""
    batch = x.shape[0]
    tile_b = _choose_tile(batch)
    batch_p = _round_up(batch, tile_b)
    out_p = _round_up(DOF, LANE)

    # Pad rows to the tile size and columns 7 -> 8 (only one extra lane of input HBM
    # traffic; the old in-kernel 7 -> 128 widening scratch is gone).
    x = x.astype(jnp.float32)
    x = jnp.zeros((batch_p, IN_PAD), jnp.float32).at[:batch, :POSE].set(x)

    in_specs = [pl.BlockSpec((tile_b, IN_PAD), lambda i: (i, 0))]
    for arr in params_flat:
        # Constant block index -> fetched once, stays VMEM-resident across grid steps.
        in_specs.append(pl.BlockSpec(arr.shape, lambda i: (0, 0)))

    out = pl.pallas_call(
        iknet_kernel,
        # bf16 output: lane-dense 128-wide unmasked stores, half the HBM write bytes.
        out_shape=jax.ShapeDtypeStruct((batch_p, out_p), jnp.bfloat16),
        grid_spec=pltpu.PrefetchScalarGridSpec(
            num_scalar_prefetch=0,
            grid=(batch_p // tile_b,),
            in_specs=in_specs,
            out_specs=pl.BlockSpec((tile_b, out_p), lambda i: (i, 0)),
        ),
        compiler_params=pltpu.CompilerParams(
            dimension_semantics=("parallel",),
        ),
    )(x, *params_flat)

    return out[:batch, :DOF].astype(jnp.float32)


def iknet_reference_f32(x, params):
    h = x
    for i, (w, b) in enumerate(params):
        h = h @ w + b
        if i < len(params) - 1:
            h = jnp.maximum(h, 0.0)
    return h


def iknet_reference_bf16(x, params):
    """Emulates kernel numerics: bf16 matmul inputs, f32 acc, f32 bias, bf16 output."""
    h = x
    for i, (w, b) in enumerate(params):
        h = jnp.dot(h.astype(jnp.bfloat16), w.astype(jnp.bfloat16),
                    preferred_element_type=jnp.float32) + b
        if i < len(params) - 1:
            h = jnp.maximum(h, 0.0)
    return h.astype(jnp.bfloat16).astype(jnp.float32)


if __name__ == "__main__":
    key = jax.random.PRNGKey(0)
    key, kx, kx2 = jax.random.split(key, 3)

    params = init_params(key)
    params_flat = _pad_params(params)

    # Small-batch case (as in the original demo): single tile, grid=(1,).
    batch = 2
    x = jax.random.normal(kx, (batch, POSE), jnp.float32)
    y = jax.block_until_ready(iknet_forward(x, params_flat))
    assert y.shape == (batch, DOF), y.shape
    y_bf = iknet_reference_bf16(x, params)
    y_f32 = iknet_reference_f32(x, params)
    assert jnp.allclose(y, y_bf, atol=2e-2, rtol=2e-2), (y, y_bf)
    assert jnp.allclose(y, y_f32, atol=6e-2, rtol=6e-2), (y, y_f32)

    # Multi-tile batch case: tile_b=1024, grid=(2,), exercises row padding and the
    # streamed batch pipeline.
    batch2 = 1300
    x2 = jax.random.normal(kx2, (batch2, POSE), jnp.float32)
    y2 = jax.block_until_ready(iknet_forward(x2, params_flat))
    assert y2.shape == (batch2, DOF), y2.shape
    y2_bf = iknet_reference_bf16(x2, params)
    y2_f32 = iknet_reference_f32(x2, params)
    assert jnp.allclose(y2, y2_bf, atol=2e-2, rtol=2e-2)
    assert jnp.allclose(y2, y2_f32, atol=6e-2, rtol=6e-2)

    print("KERNEL_OK")
</pallas_src>

<mosaic_0001>
module attributes {stable_mosaic.version = 11 : i64} {
  func.func @iknet_kernel(%arg0: i32, %arg1: memref<8x8xf32, #tpu.memory_space<vmem>>, %arg2: memref<8x512xbf16, #tpu.memory_space<vmem>>, %arg3: memref<1x512xf32, #tpu.memory_space<vmem>>, %arg4: memref<512x384xbf16, #tpu.memory_space<vmem>>, %arg5: memref<1x384xf32, #tpu.memory_space<vmem>>, %arg6: memref<384x256xbf16, #tpu.memory_space<vmem>>, %arg7: memref<1x256xf32, #tpu.memory_space<vmem>>, %arg8: memref<256x128xbf16, #tpu.memory_space<vmem>>, %arg9: memref<1x128xf32, #tpu.memory_space<vmem>>, %arg10: memref<128x128xbf16, #tpu.memory_space<vmem>>, %arg11: memref<1x128xf32, #tpu.memory_space<vmem>>, %arg12: memref<128x128xbf16, #tpu.memory_space<vmem>>, %arg13: memref<1x128xf32, #tpu.memory_space<vmem>>, %arg14: memref<8x128xbf16, #tpu.memory_space<vmem>>) attributes {dimension_semantics = [#tpu.dimension_semantics<parallel>], iteration_bounds = array<i64: 1>, scalar_prefetch = 0 : i64, scratch_operands = 0 : i64, tpu.core_type = #tpu.core_type<tc>, window_params = [{transform_indices = @transform_0, window_bounds = array<i64: 8, 8>}, {pipeline_mode = #tpu.pipeline_mode<synchronous>, transform_indices = @transform_1, window_bounds = array<i64: 8, 512>}, {pipeline_mode = #tpu.pipeline_mode<synchronous>, transform_indices = @transform_2, window_bounds = array<i64: 1, 512>}, {pipeline_mode = #tpu.pipeline_mode<synchronous>, transform_indices = @transform_3, window_bounds = array<i64: 512, 384>}, {pipeline_mode = #tpu.pipeline_mode<synchronous>, transform_indices = @transform_4, window_bounds = array<i64: 1, 384>}, {pipeline_mode = #tpu.pipeline_mode<synchronous>, transform_indices = @transform_5, window_bounds = array<i64: 384, 256>}, {pipeline_mode = #tpu.pipeline_mode<synchronous>, transform_indices = @transform_6, window_bounds = array<i64: 1, 256>}, {pipeline_mode = #tpu.pipeline_mode<synchronous>, transform_indices = @transform_7, window_bounds = array<i64: 256, 128>}, {pipeline_mode = #tpu.pipeline_mode<synchronous>, transform_indices = @transform_8, window_bounds = array<i64: 1, 128>}, {pipeline_mode = #tpu.pipeline_mode<synchronous>, transform_indices = @transform_9, window_bounds = array<i64: 128, 128>}, {pipeline_mode = #tpu.pipeline_mode<synchronous>, transform_indices = @transform_10, window_bounds = array<i64: 1, 128>}, {pipeline_mode = #tpu.pipeline_mode<synchronous>, transform_indices = @transform_11, window_bounds = array<i64: 128, 128>}, {pipeline_mode = #tpu.pipeline_mode<synchronous>, transform_indices = @transform_12, window_bounds = array<i64: 1, 128>}, {transform_indices = @transform_13, window_bounds = array<i64: 8, 128>}]} {
    %c0 = arith.constant 0 : index
    %c0_0 = arith.constant 0 : index
    %0 = vector.load %arg1[%c0, %c0_0] : memref<8x8xf32, #tpu.memory_space<vmem>>, vector<8x8xf32>
    %1 = arith.truncf %0 : vector<8x8xf32> to vector<8x8xbf16>
    %c0_1 = arith.constant 0 : index
    %c0_2 = arith.constant 0 : index
    %2 = vector.load %arg2[%c0_1, %c0_2] : memref<8x512xbf16, #tpu.memory_space<vmem>>, vector<8x512xbf16>
    %cst = arith.constant dense<0.000000e+00> : vector<8x512xf32>
    %3 = tpu.matmul %1, %2, %cst {dimension_numbers = #tpu.dot_dimension_numbers<[1], [0], [0], [1], [0, 0, 1, 1], [], []>} : vector<8x8xbf16>, vector<8x512xbf16>, vector<8x512xf32> -> vector<8x512xf32>
    %c0_3 = arith.constant 0 : index
    %c0_4 = arith.constant 0 : index
    %4 = vector.load %arg3[%c0_3, %c0_4] : memref<1x512xf32, #tpu.memory_space<vmem>>, vector<1x512xf32>
    %5 = vector.broadcast %4 : vector<1x512xf32> to vector<8x512xf32>
    %6 = arith.addf %3, %5 : vector<8x512xf32>
    %cst_5 = arith.constant 0.000000e+00 : f32
    %7 = vector.broadcast %cst_5 : f32 to vector<8x512xf32>
    %8 = arith.maximumf %6, %7 : vector<8x512xf32>
    %9 = arith.truncf %8 : vector<8x512xf32> to vector<8x512xbf16>
    %c0_6 = arith.constant 0 : index
    %c0_7 = arith.constant 0 : index
    %10 = vector.load %arg4[%c0_6, %c0_7] : memref<512x384xbf16, #tpu.memory_space<vmem>>, vector<512x384xbf16>
    %cst_8 = arith.constant dense<0.000000e+00> : vector<8x384xf32>
    %11 = tpu.matmul %9, %10, %cst_8 {dimension_numbers = #tpu.dot_dimension_numbers<[1], [0], [0], [1], [0, 0, 1, 1], [], []>} : vector<8x512xbf16>, vector<512x384xbf16>, vector<8x384xf32> -> vector<8x384xf32>
    %c0_9 = arith.constant 0 : index
    %c0_10 = arith.constant 0 : index
    %12 = vector.load %arg5[%c0_9, %c0_10] : memref<1x384xf32, #tpu.memory_space<vmem>>, vector<1x384xf32>
    %13 = vector.broadcast %12 : vector<1x384xf32> to vector<8x384xf32>
    %14 = arith.addf %11, %13 : vector<8x384xf32>
    %cst_11 = arith.constant 0.000000e+00 : f32
    %15 = vector.broadcast %cst_11 : f32 to vector<8x384xf32>
    %16 = arith.maximumf %14, %15 : vector<8x384xf32>
    %17 = arith.truncf %16 : vector<8x384xf32> to vector<8x384xbf16>
    %c0_12 = arith.constant 0 : index
    %c0_13 = arith.constant 0 : index
    %18 = vector.load %arg6[%c0_12, %c0_13] : memref<384x256xbf16, #tpu.memory_space<vmem>>, vector<384x256xbf16>
    %cst_14 = arith.constant dense<0.000000e+00> : vector<8x256xf32>
    %19 = tpu.matmul %17, %18, %cst_14 {dimension_numbers = #tpu.dot_dimension_numbers<[1], [0], [0], [1], [0, 0, 1, 1], [], []>} : vector<8x384xbf16>, vector<384x256xbf16>, vector<8x256xf32> -> vector<8x256xf32>
    %c0_15 = arith.constant 0 : index
    %c0_16 = arith.constant 0 : index
    %20 = vector.load %arg7[%c0_15, %c0_16] : memref<1x256xf32, #tpu.memory_space<vmem>>, vector<1x256xf32>
    %21 = vector.broadcast %20 : vector<1x256xf32> to vector<8x256xf32>
    %22 = arith.addf %19, %21 : vector<8x256xf32>
    %cst_17 = arith.constant 0.000000e+00 : f32
    %23 = vector.broadcast %cst_17 : f32 to vector<8x256xf32>
    %24 = arith.maximumf %22, %23 : vector<8x256xf32>
    %25 = arith.truncf %24 : vector<8x256xf32> to vector<8x256xbf16>
    %c0_18 = arith.constant 0 : index
    %c0_19 = arith.constant 0 : index
    %26 = vector.load %arg8[%c0_18, %c0_19] : memref<256x128xbf16, #tpu.memory_space<vmem>>, vector<256x128xbf16>
    %cst_20 = arith.constant dense<0.000000e+00> : vector<8x128xf32>
    %27 = tpu.matmul %25, %26, %cst_20 {dimension_numbers = #tpu.dot_dimension_numbers<[1], [0], [0], [1], [0, 0, 1, 1], [], []>} : vector<8x256xbf16>, vector<256x128xbf16>, vector<8x128xf32> -> vector<8x128xf32>
    %c0_21 = arith.constant 0 : index
    %c0_22 = arith.constant 0 : index
    %28 = vector.load %arg9[%c0_21, %c0_22] : memref<1x128xf32, #tpu.memory_space<vmem>>, vector<1x128xf32>
    %29 = vector.broadcast %28 : vector<1x128xf32> to vector<8x128xf32>
    %30 = arith.addf %27, %29 : vector<8x128xf32>
    %cst_23 = arith.constant 0.000000e+00 : f32
    %31 = vector.broadcast %cst_23 : f32 to vector<8x128xf32>
    %32 = arith.maximumf %30, %31 : vector<8x128xf32>
    %33 = arith.truncf %32 : vector<8x128xf32> to vector<8x128xbf16>
    %c0_24 = arith.constant 0 : index
    %c0_25 = arith.constant 0 : index
    %34 = vector.load %arg10[%c0_24, %c0_25] : memref<128x128xbf16, #tpu.memory_space<vmem>>, vector<128x128xbf16>
    %cst_26 = arith.constant dense<0.000000e+00> : vector<8x128xf32>
    %35 = tpu.matmul %33, %34, %cst_26 {dimension_numbers = #tpu.dot_dimension_numbers<[1], [0], [0], [1], [0, 0, 1, 1], [], []>} : vector<8x128xbf16>, vector<128x128xbf16>, vector<8x128xf32> -> vector<8x128xf32>
    %c0_27 = arith.constant 0 : index
    %c0_28 = arith.constant 0 : index
    %36 = vector.load %arg11[%c0_27, %c0_28] : memref<1x128xf32, #tpu.memory_space<vmem>>, vector<1x128xf32>
    %37 = vector.broadcast %36 : vector<1x128xf32> to vector<8x128xf32>
    %38 = arith.addf %35, %37 : vector<8x128xf32>
    %cst_29 = arith.constant 0.000000e+00 : f32
    %39 = vector.broadcast %cst_29 : f32 to vector<8x128xf32>
    %40 = arith.maximumf %38, %39 : vector<8x128xf32>
    %41 = arith.truncf %40 : vector<8x128xf32> to vector<8x128xbf16>
    %c0_30 = arith.constant 0 : index
    %c0_31 = arith.constant 0 : index
    %42 = vector.load %arg12[%c0_30, %c0_31] : memref<128x128xbf16, #tpu.memory_space<vmem>>, vector<128x128xbf16>
    %cst_32 = arith.constant dense<0.000000e+00> : vector<8x128xf32>
    %43 = tpu.matmul %41, %42, %cst_32 {dimension_numbers = #tpu.dot_dimension_numbers<[1], [0], [0], [1], [0, 0, 1, 1], [], []>} : vector<8x128xbf16>, vector<128x128xbf16>, vector<8x128xf32> -> vector<8x128xf32>
    %c0_33 = arith.constant 0 : index
    %c0_34 = arith.constant 0 : index
    %44 = vector.load %arg13[%c0_33, %c0_34] : memref<1x128xf32, #tpu.memory_space<vmem>>, vector<1x128xf32>
    %45 = vector.broadcast %44 : vector<1x128xf32> to vector<8x128xf32>
    %46 = arith.addf %43, %45 : vector<8x128xf32>
    %47 = arith.truncf %46 : vector<8x128xf32> to vector<8x128xbf16>
    %c0_35 = arith.constant 0 : index
    %c0_36 = arith.constant 0 : index
    %48 = vector.load %arg14[%c0_35, %c0_36] : memref<8x128xbf16, #tpu.memory_space<vmem>>, vector<8x128xbf16>
    tpu.vector_store %arg14[%c0_35, %c0_36], %47 {strides = array<i32>} : memref<8x128xbf16, #tpu.memory_space<vmem>>, vector<8x128xbf16>,
    return
  }
  func.func @transform_0(%arg0: i32) -> (i32, i32) {
    %c0_i32 = arith.constant 0 : i32
    %c0_i32_0 = arith.constant 0 : i32
    return %arg0, %c0_i32 : i32, i32
  }
  func.func @transform_1(%arg0: i32) -> (i32, i32) {
    %c0_i32 = arith.constant 0 : i32
    %c0_i32_0 = arith.constant 0 : i32
    %c0_i32_1 = arith.constant 0 : i32
    return %c0_i32, %c0_i32_0 : i32, i32
  }
  func.func @transform_2(%arg0: i32) -> (i32, i32) {
    %c0_i32 = arith.constant 0 : i32
    %c0_i32_0 = arith.constant 0 : i32
    %c0_i32_1 = arith.constant 0 : i32
    return %c0_i32, %c0_i32_0 : i32, i32
  }
  func.func @transform_3(%arg0: i32) -> (i32, i32) {
    %c0_i32 = arith.constant 0 : i32
    %c0_i32_0 = arith.constant 0 : i32
    %c0_i32_1 = arith.constant 0 : i32
    return %c0_i32, %c0_i32_0 : i32, i32
  }
  func.func @transform_4(%arg0: i32) -> (i32, i32) {
    %c0_i32 = arith.constant 0 : i32
    %c0_i32_0 = arith.constant 0 : i32
    %c0_i32_1 = arith.constant 0 : i32
    return %c0_i32, %c0_i32_0 : i32, i32
  }
  func.func @transform_5(%arg0: i32) -> (i32, i32) {
    %c0_i32 = arith.constant 0 : i32
    %c0_i32_0 = arith.constant 0 : i32
    %c0_i32_1 = arith.constant 0 : i32
    return %c0_i32, %c0_i32_0 : i32, i32
  }
  func.func @transform_6(%arg0: i32) -> (i32, i32) {
    %c0_i32 = arith.constant 0 : i32
    %c0_i32_0 = arith.constant 0 : i32
    %c0_i32_1 = arith.constant 0 : i32
    return %c0_i32, %c0_i32_0 : i32, i32
  }
  func.func @transform_7(%arg0: i32) -> (i32, i32) {
    %c0_i32 = arith.constant 0 : i32
    %c0_i32_0 = arith.constant 0 : i32
    %c0_i32_1 = arith.constant 0 : i32
    return %c0_i32, %c0_i32_0 : i32, i32
  }
  func.func @transform_8(%arg0: i32) -> (i32, i32) {
    %c0_i32 = arith.constant 0 : i32
    %c0_i32_0 = arith.constant 0 : i32
    %c0_i32_1 = arith.constant 0 : i32
    return %c0_i32, %c0_i32_0 : i32, i32
  }
  func.func @transform_9(%arg0: i32) -> (i32, i32) {
    %c0_i32 = arith.constant 0 : i32
    %c0_i32_0 = arith.constant 0 : i32
    %c0_i32_1 = arith.constant 0 : i32
    return %c0_i32, %c0_i32_0 : i32, i32
  }
  func.func @transform_10(%arg0: i32) -> (i32, i32) {
    %c0_i32 = arith.constant 0 : i32
    %c0_i32_0 = arith.constant 0 : i32
    %c0_i32_1 = arith.constant 0 : i32
    return %c0_i32, %c0_i32_0 : i32, i32
  }
  func.func @transform_11(%arg0: i32) -> (i32, i32) {
    %c0_i32 = arith.constant 0 : i32
    %c0_i32_0 = arith.constant 0 : i32
    %c0_i32_1 = arith.constant 0 : i32
    return %c0_i32, %c0_i32_0 : i32, i32
  }
  func.func @transform_12(%arg0: i32) -> (i32, i32) {
    %c0_i32 = arith.constant 0 : i32
    %c0_i32_0 = arith.constant 0 : i32
    %c0_i32_1 = arith.constant 0 : i32
    return %c0_i32, %c0_i32_0 : i32, i32
  }
  func.func @transform_13(%arg0: i32) -> (i32, i32) {
    %c0_i32 = arith.constant 0 : i32
    %c0_i32_0 = arith.constant 0 : i32
    return %arg0, %c0_i32 : i32, i32
  }
}

</mosaic_0001>

<llo_original>
// kernel: iknet_forward.1
$region0: #{iknet_forward.1}
  #allocation0 [shape = 'u32[]', space=smem, size = 0x4, offset = 0x4, fixed_abs, tag = 'smem constant byte address 0x4 - core index']
  #allocation1 [shape = 'u32[144,128]{1,0:T(1,128)}', space=vmem, size = 0x12000, scoped, tag = 'internal scratch']
  %s0 = inlined_call_operand.vmem [shape: f32[8,8], index: 0, kind: input, shape index: {}]
  %s1 = inlined_call_operand.hbm [shape: bf16[8,512], index: 1, kind: input, shape index: {}]
  %s2 = inlined_call_operand.vmem [shape: f32[1,512], index: 2, kind: input, shape index: {}]
  %s3 = inlined_call_operand.hbm [shape: bf16[512,384], index: 3, kind: input, shape index: {}]
  %s4 = inlined_call_operand.vmem [shape: f32[1,384], index: 4, kind: input, shape index: {}]
  %s5 = inlined_call_operand.hbm [shape: bf16[384,256], index: 5, kind: input, shape index: {}]
  %s6 = inlined_call_operand.vmem [shape: f32[1,256], index: 6, kind: input, shape index: {}]
  %s7 = inlined_call_operand.hbm [shape: bf16[256,128], index: 7, kind: input, shape index: {}]
  %s8 = inlined_call_operand.vmem [shape: f32[1,128], index: 8, kind: input, shape index: {}]
  %s9 = inlined_call_operand.hbm [shape: bf16[128,128], index: 9, kind: input, shape index: {}]
  %s10 = inlined_call_operand.vmem [shape: f32[1,128], index: 10, kind: input, shape index: {}]
  %s11 = inlined_call_operand.hbm [shape: bf16[128,128], index: 11, kind: input, shape index: {}]
  %s12 = inlined_call_operand.vmem [shape: f32[1,128], index: 12, kind: input, shape index: {}]
  %s13 = inlined_call_operand.vmem [shape: bf16[8,128], index: 13, kind: output, shape index: {}]
  %s14 = sld [smem:[#allocation0]]
  $region86: #{iknet_forward.1} parent=0
    _
  %s16 = ssub.s32 1, %s14
  %s17 = scalar_select 0, %s16, %s14
  $region1: #{iknet_forward.1} parent=0
    #allocation2 [shape = 'u8[8192]{0}', space=vmem, size = 0x2000, scoped, tag = 'input window, operand 1, single buffered']
    #allocation3 [shape = 's32[1]{0}', space=sflag, size = 0x4, scoped, tag = 'scoped memory for iknet_forward.1']
    #allocation4 [shape = 'u8[393216]{0}', space=vmem, size = 0x60000, scoped, tag = 'input window, operand 3, single buffered']
    #allocation5 [shape = 's32[1]{0}', space=sflag, size = 0x4, scoped, tag = 'scoped memory for iknet_forward.1']
    #allocation6 [shape = 'u8[196608]{0}', space=vmem, size = 0x30000, scoped, tag = 'input window, operand 5, single buffered']
    #allocation7 [shape = 'u8[65536]{0}', space=vmem, size = 0x10000, scoped, tag = 'input window, operand 7, single buffered']
    #allocation8 [shape = 's32[1]{0}', space=sflag, size = 0x4, scoped, tag = 'scoped memory for iknet_forward.1']
    #allocation9 [shape = 'u8[32768]{0}', space=vmem, size = 0x8000, scoped, tag = 'input window, operand 9, single buffered']
    #allocation10 [shape = 'u8[32768]{0}', space=vmem, size = 0x8000, scoped, tag = 'input window, operand 11, single buffered']
    #allocation11 [shape = 's32[1]{0}', space=sflag, size = 0x4, scoped, tag = 'scoped memory for iknet_forward.1']
    %18 = vsyncpa [#allocation3], 0
    %19 = vsyncpa [#allocation5], 0
    %20 = vsyncpa [#allocation8], 0
    %21 = vsyncpa [#allocation11], 0
    // Predicated region
    $region2: #{iknet_forward.1} parent=1 // pred_check
      _
    $region3: #{iknet_forward.1} parent=1 // pred_check_branch
      %23 = sbr.rel (0) target = $region5
    $region4: #{iknet_forward.1} parent=1 // pred_region
      _
    $region5: #{iknet_forward.1} parent=1 // pred_fallthru
      _
    // Predicated region
    $region6: #{iknet_forward.1} parent=1 // pred_check
      _
    $region7: #{iknet_forward.1} parent=1 // pred_check_branch
      %25 = sbr.rel (0) target = $region9
    $region8: #{iknet_forward.1} parent=1 // pred_region
      %s27 = ssub.s32 256, 256
      %28 = vsyncadd [#allocation3], %s27
      %s30 = sshll.u32 [#allocation2], 4
      %s31 = int_to_ptr.vmem [resolvable:$true] %s30
      %33 = dma.hbm_to_vmem [thread:$0]  %s1, 256, %s31, [#allocation3]
    $region9: #{iknet_forward.1} parent=1 // pred_fallthru
      _
    // Predicated region
    $region10: #{iknet_forward.1} parent=1 // pred_check
      _
    $region11: #{iknet_forward.1} parent=1 // pred_check_branch
      %35 = sbr.rel (0) target = $region13
    $region12: #{iknet_forward.1} parent=1 // pred_region
      _
    $region13: #{iknet_forward.1} parent=1 // pred_fallthru
      _
    // Predicated region
    $region14: #{iknet_forward.1} parent=1 // pred_check
      _
    $region15: #{iknet_forward.1} parent=1 // pred_check_branch
      %37 = sbr.rel (0) target = $region17
    $region16: #{iknet_forward.1} parent=1 // pred_region
      %s39 = ssub.s32 12288, 12288
      %40 = vsyncadd [#allocation5], %s39
      %s41 = sshll.u32 [#allocation4], 4
      %s42 = int_to_ptr.vmem [resolvable:$true] %s41
      %47 = dma.hbm_to_vmem [thread:$0]  %s3, 12288, %s42, [#allocation5], 192, 192, 12
    $region17: #{iknet_forward.1} parent=1 // pred_fallthru
      _
    // Predicated region
    $region18: #{iknet_forward.1} parent=1 // pred_check
      _
    $region19: #{iknet_forward.1} parent=1 // pred_check_branch
      %49 = sbr.rel (0) target = $region21
    $region20: #{iknet_forward.1} parent=1 // pred_region
      _
    $region21: #{iknet_forward.1} parent=1 // pred_fallthru
      _
    // Predicated region
    $region22: #{iknet_forward.1} parent=1 // pred_check
      _
    $region23: #{iknet_forward.1} parent=1 // pred_check_branch
      %51 = sbr.rel (0) target = $region25
    $region24: #{iknet_forward.1} parent=1 // pred_region
      %s53 = ssub.s32 6144, 6144
      %54 = vsyncadd [#allocation5], %s53
      %s55 = sshll.u32 [#allocation6], 4
      %s56 = int_to_ptr.vmem [resolvable:$true] %s55
      %61 = dma.hbm_to_vmem [thread:$0]  %s5, 6144, %s56, [#allocation5], 128, 128, 8
    $region25: #{iknet_forward.1} parent=1 // pred_fallthru
      _
    // Predicated region
    $region26: #{iknet_forward.1} parent=1 // pred_check
      _
    $region27: #{iknet_forward.1} parent=1 // pred_check_branch
      %63 = sbr.rel (0) target = $region29
    $region28: #{iknet_forward.1} parent=1 // pred_region
      _
    $region29: #{iknet_forward.1} parent=1 // pred_fallthru
      _
    // Predicated region
    $region30: #{iknet_forward.1} parent=1 // pred_check
      _
    $region31: #{iknet_forward.1} parent=1 // pred_check_branch
      %65 = sbr.rel (0) target = $region33
    $region32: #{iknet_forward.1} parent=1 // pred_region
      %s67 = ssub.s32 2048, 2048
      %68 = vsyncadd [#allocation8], %s67
      %s69 = sshll.u32 [#allocation7], 4
      %s70 = int_to_ptr.vmem [resolvable:$true] %s69
      %75 = dma.hbm_to_vmem [thread:$0]  %s7, 2048, %s70, [#allocation8], 64, 64, 4
    $region33: #{iknet_forward.1} parent=1 // pred_fallthru
      _
    // Predicated region
    $region34: #{iknet_forward.1} parent=1 // pred_check
      _
    $region35: #{iknet_forward.1} parent=1 // pred_check_branch
      %77 = sbr.rel (0) target = $region37
    $region36: #{iknet_forward.1} parent=1 // pred_region
      _
    $region37: #{iknet_forward.1} parent=1 // pred_fallthru
      _
    // Predicated region
    $region38: #{iknet_forward.1} parent=1 // pred_check
      _
    $region39: #{iknet_forward.1} parent=1 // pred_check_branch
      %79 = sbr.rel (0) target = $region41
    $region40: #{iknet_forward.1} parent=1 // pred_region
      %s81 = ssub.s32 1024, 1024
      %82 = vsyncadd [#allocation8], %s81
      %s83 = sshll.u32 [#allocation9], 4
      %s84 = int_to_ptr.vmem [resolvable:$true] %s83
      %89 = dma.hbm_to_vmem [thread:$0]  %s9, 1024, %s84, [#allocation8], 64, 64, 4
    $region41: #{iknet_forward.1} parent=1 // pred_fallthru
      _
    // Predicated region
    $region42: #{iknet_forward.1} parent=1 // pred_check
      _
    $region43: #{iknet_forward.1} parent=1 // pred_check_branch
      %91 = sbr.rel (0) target = $region45
    $region44: #{iknet_forward.1} parent=1 // pred_region
      _
    $region45: #{iknet_forward.1} parent=1 // pred_fallthru
      _
    // Predicated region
    $region46: #{iknet_forward.1} parent=1 // pred_check
      _
    $region47: #{iknet_forward.1} parent=1 // pred_check_branch
      %93 = sbr.rel (0) target = $region49
    $region48: #{iknet_forward.1} parent=1 // pred_region
      %s95 = ssub.s32 1024, 1024
      %96 = vsyncadd [#allocation11], %s95
      %s97 = sshll.u32 [#allocation10], 4
      %s98 = int_to_ptr.vmem [resolvable:$true] %s97
      %103 = dma.hbm_to_vmem [thread:$0]  %s11, 1024, %s98, [#allocation11], 64, 64, 4
    $region49: #{iknet_forward.1} parent=1 // pred_fallthru
      _
    // Predicated region
    $region50: #{iknet_forward.1} parent=1 // pred_check
      _
    $region51: #{iknet_forward.1} parent=1 // pred_check_branch
      %105 = sbr.rel (0) target = $region53
    $region52: #{iknet_forward.1} parent=1 // pred_region
      _
    $region53: #{iknet_forward.1} parent=1 // pred_fallthru
      _
    // Predicated region
    $region54: #{iknet_forward.1} parent=1 // pred_check
      _
    $region55: #{iknet_forward.1} parent=1 // pred_check_branch
      %107 = sbr.rel (0) target = $region57
    $region56: #{iknet_forward.1} parent=1 // pred_region
      %108 = dma.done [#allocation3], 256
    $region57: #{iknet_forward.1} parent=1 // pred_fallthru
      _
    // Predicated region
    $region58: #{iknet_forward.1} parent=1 // pred_check
      _
    $region59: #{iknet_forward.1} parent=1 // pred_check_branch
      %110 = sbr.rel (0) target = $region61
    $region60: #{iknet_forward.1} parent=1 // pred_region
      %111 = dma.done [#allocation5], 12288
    $region61: #{iknet_forward.1} parent=1 // pred_fallthru
      _
    // Predicated region
    $region62: #{iknet_forward.1} parent=1 // pred_check
      _
    $region63: #{iknet_forward.1} parent=1 // pred_check_branch
      %113 = sbr.rel (0) target = $region65
    $region64: #{iknet_forward.1} parent=1 // pred_region
      %114 = dma.done [#allocation5], 6144
    $region65: #{iknet_forward.1} parent=1 // pred_fallthru
      _
    // Predicated region
    $region66: #{iknet_forward.1} parent=1 // pred_check
      _
    $region67: #{iknet_forward.1} parent=1 // pred_check_branch
      %116 = sbr.rel (0) target = $region69
    $region68: #{iknet_forward.1} parent=1 // pred_region
      %117 = dma.done [#allocation8], 2048
    $region69: #{iknet_forward.1} parent=1 // pred_fallthru
      _
    // Predicated region
    $region70: #{iknet_forward.1} parent=1 // pred_check
      _
    $region71: #{iknet_forward.1} parent=1 // pred_check_branch
      %119 = sbr.rel (0) target = $region73
    $region72: #{iknet_forward.1} parent=1 // pred_region
      %120 = dma.done [#allocation8], 1024
    $region73: #{iknet_forward.1} parent=1 // pred_fallthru
      _
    // Predicated region
    $region74: #{iknet_forward.1} parent=1 // pred_check
      _
    $region75: #{iknet_forward.1} parent=1 // pred_check_branch
      %122 = sbr.rel (0) target = $region77
    $region76: #{iknet_forward.1} parent=1 // pred_region
      %123 = dma.done [#allocation11], 1024
    $region77: #{iknet_forward.1} parent=1 // pred_fallthru
      _
    %v125 = vld [vmem:[%s0] sm:$0xff]
    %v126 = vpack.c.bf16 %v125, %v125
    %v127 = vld [vmem:[#allocation2] sm:$0xff]
    %v128 = vld [vmem:[#allocation2 + $0x8] sm:$0xff]
    %v129 = vld [vmem:[%s2] sm:$0xf]
    %v131 = vlaneseq
    %v132 = vshrl.u32 %v131, 7
    %v133 = vsub.s32 0, %v132
    %v134 = vrot.slane %v129, %v133
    %v135 = vlaneseq
    %v136 = vshrl.u32 %v135, 7
    %v137 = vsub.s32 1, %v136
    %v138 = vrot.slane %v129, %v137
    %v139 = vlaneseq
    %v140 = vshrl.u32 %v139, 7
    %v141 = vsub.s32 2, %v140
    %v142 = vrot.slane %v129, %v141
    %v143 = vlaneseq
    %v144 = vshrl.u32 %v143, 7
    %v145 = vsub.s32 3, %v144
    %v146 = vrot.slane %v129, %v145
    %v153 = vunpack.c.l.b16 %v127
    %v154 = vunpack.c.h.b16 %v127
    %v155 = vunpack.c.l.b16 %v128
    %v156 = vunpack.c.h.b16 %v128
    %v157 = vpack.c.b16 %v153, %v153
    %v158 = vpack.c.b16 %v154, %v154
    %v159 = vpack.c.b16 %v155, %v155
    %v160 = vpack.c.b16 %v156, %v156
    %vm161 = vcmask 64512
    %v163 = vsel %vm161, %v126, 0
    %vm165 = vcmask 1043456
    %v167 = vsel %vm165, %v157, 0
    %v170 = vsel %vm165, %v158, 0
    %v173 = vsel %vm165, %v159, 0
    %v176 = vsel %vm165, %v160, 0
    %178 = vmatprep.subr.bf16.mxu0 %v170
    %179 = vmatpush1.bf16.msra.mxu0 %v167
    %180 = vmatprep.subr.bf16.mxu0 0
    %181 = vmatpush1.bf16.msra.mxu0 0
    %182 = vmatprep.subr.bf16.mxu0 0
    %183 = vmatpush1.bf16.msra.mxu0 0
    %184 = vmatprep.subr.bf16.mxu0 0
    %185 = vmatpush1.bf16.msra.mxu0 0
    %186 = vmatprep.subr.bf16.mxu0 0
    %187 = vmatpush1.bf16.msra.mxu0 0
    %188 = vmatprep.subr.bf16.mxu0 0
    %189 = vmatpush1.bf16.msra.mxu0 0
    %190 = vmatprep.subr.bf16.mxu0 0
    %191 = vmatpush1.bf16.msra.mxu0 0
    %192 = vmatprep.subr.bf16.mxu0 0
    %193 = vmatpush1.bf16.msra.mxu0 0
    %194 = vmatprep.subr.bf16.mxu0 0
    %195 = vmatpush1.bf16.msra.mxu0 0
    %196 = vmatprep.subr.bf16.mxu0 0
    %197 = vmatpush1.bf16.msra.mxu0 0
    %198 = vmatprep.subr.bf16.mxu0 0
    %199 = vmatpush1.bf16.msra.mxu0 0
    %200 = vmatprep.subr.bf16.mxu0 0
    %201 = vmatpush1.bf16.msra.mxu0 0
    %202 = vmatprep.subr.bf16.mxu0 0
    %203 = vmatpush1.bf16.msra.mxu0 0
    %204 = vmatprep.subr.bf16.mxu0 0
    %205 = vmatpush1.bf16.msra.mxu0 0
    %206 = vmatprep.subr.bf16.mxu0 0
    %207 = vmatpush1.bf16.msra.mxu0 0
    %208 = vmatprep.subr.bf16.mxu0 0
    %209 = vmatpush1.bf16.msra.mxu0 0
    %210 = vmatprep.mubr.bf16.mxu0 0
    %211 = vmatmul.mubr.bf16.gmra.mrb[0].mxu0 %v163
    %v212 = vpop.f32.mrb[0].mxu0
    %v213 = vadd.f32 %v134, %v212
    %v214 = vpop.f32.mrb[0].mxu0
    %v215 = vadd.f32 %v138, %v214
    %v216 = vpop.f32.mrb[0].mxu0
    %v217 = vpop.f32.mrb[0].mxu0
    %218 = vdwg.mxu0
    %219 = vmatprep.subr.bf16.mxu0 %v176
    %220 = vmatpush1.bf16.msra.mxu0 %v173
    %221 = vmatprep.subr.bf16.mxu0 0
    %222 = vmatpush1.bf16.msra.mxu0 0
    %223 = vmatprep.subr.bf16.mxu0 0
    %224 = vmatpush1.bf16.msra.mxu0 0
    %225 = vmatprep.subr.bf16.mxu0 0
    %226 = vmatpush1.bf16.msra.mxu0 0
    %227 = vmatprep.subr.bf16.mxu0 0
    %228 = vmatpush1.bf16.msra.mxu0 0
    %229 = vmatprep.subr.bf16.mxu0 0
    %230 = vmatpush1.bf16.msra.mxu0 0
    %231 = vmatprep.subr.bf16.mxu0 0
    %232 = vmatpush1.bf16.msra.mxu0 0
    %233 = vmatprep.subr.bf16.mxu0 0
    %234 = vmatpush1.bf16.msra.mxu0 0
    %235 = vmatprep.subr.bf16.mxu0 0
    %236 = vmatpush1.bf16.msra.mxu0 0
    %237 = vmatprep.subr.bf16.mxu0 0
    %238 = vmatpush1.bf16.msra.mxu0 0
    %239 = vmatprep.subr.bf16.mxu0 0
    %240 = vmatpush1.bf16.msra.mxu0 0
    %241 = vmatprep.subr.bf16.mxu0 0
    %242 = vmatpush1.bf16.msra.mxu0 0
    %243 = vmatprep.subr.bf16.mxu0 0
    %244 = vmatpush1.bf16.msra.mxu0 0
    %245 = vmatprep.subr.bf16.mxu0 0
    %246 = vmatpush1.bf16.msra.mxu0 0
    %247 = vmatprep.subr.bf16.mxu0 0
    %248 = vmatpush1.bf16.msra.mxu0 0
    %249 = vmatprep.subr.bf16.mxu0 0
    %250 = vmatpush1.bf16.msra.mxu0 0
    %251 = vmatprep.mubr.bf16.mxu0 0
    %252 = vmatmul.mubr.bf16.gmra.mrb[0].mxu0 %v163
    %v253 = vpop.f32.mrb[0].mxu0
    %v254 = vadd.f32 %v142, %v253
    %v255 = vpop.f32.mrb[0].mxu0
    %v256 = vadd.f32 %v146, %v255
    %v257 = vpop.f32.mrb[0].mxu0
    %v258 = vpop.f32.mrb[0].mxu0
    %259 = vdwg.mxu0
    %v260 = vmax.f32 %v213, 0.0
    %v261 = vmax.f32 %v215, 0.0
    %v262 = vmax.f32 %v254, 0.0
    %v263 = vmax.f32 %v256, 0.0
    %v264 = vpack.c.bf16 %v260, %v260
    %v265 = vpack.c.bf16 %v261, %v261
    %v266 = vpack.c.bf16 %v262, %v262
    %v267 = vpack.c.bf16 %v263, %v263
    %v268 = vld [vmem:[#allocation4] sm:$0xff]
    %v269 = vld [vmem:[#allocation4 + $0x8] sm:$0xf]
    %v270 = vld [vmem:[#allocation4 + $0xc] sm:$0xff]
    %v271 = vld [vmem:[#allocation4 + $0x14] sm:$0xf]
    %v272 = vld [vmem:[#allocation4 + $0x18] sm:$0xff]
    %v273 = vld [vmem:[#allocation4 + $0x20] sm:$0xf]
    %v274 = vld [vmem:[#allocation4 + $0x24] sm:$0xff]
    %v275 = vld [vmem:[#allocation4 + $0x2c] sm:$0xf]
    %v276 = vld [vmem:[#allocation4 + $0x30] sm:$0xff]
    %v277 = vld [vmem:[#allocation4 + $0x38] sm:$0xf]
    %v278 = vld [vmem:[#allocation4 + $0x3c] sm:$0xff]
    %v279 = vld [vmem:[#allocation4 + $0x44] sm:$0xf]
    %v280 = vld [vmem:[#allocation4 + $0x48] sm:$0xff]
    %v281 = vld [vmem:[#allocation4 + $0x50] sm:$0xf]
    %v282 = vld [vmem:[#allocation4 + $0x54] sm:$0xff]
    %v283 = vld [vmem:[#allocation4 + $0x5c] sm:$0xf]
    %v284 = vld [vmem:[#allocation4 + $0x60] sm:$0xff]
    %v285 = vld [vmem:[#allocation4 + $0x68] sm:$0xf]
    %v286 = vld [vmem:[#allocation4 + $0x6c] sm:$0xff]
    %v287 = vld [vmem:[#allocation4 + $0x74] sm:$0xf]
    %v288 = vld [vmem:[#allocation4 + $0x78] sm:$0xff]
    %v289 = vld [vmem:[#allocation4 + $0x80] sm:$0xf]
    %v290 = vld [vmem:[#allocation4 + $0x84] sm:$0xff]
    %v291 = vld [vmem:[#allocation4 + $0x8c] sm:$0xf]
    %v292 = vld [vmem:[#allocation4 + $0x90] sm:$0xff]
    %v293 = vld [vmem:[#allocation4 + $0x98] sm:$0xf]
    %v294 = vld [vmem:[#allocation4 + $0x9c] sm:$0xff]
    %v295 = vld [vmem:[#allocation4 + $0xa4] sm:$0xf]
    %v296 = vld [vmem:[#allocation4 + $0xa8] sm:$0xff]
    %v297 = vld [vmem:[#allocation4 + $0xb0] sm:$0xf]
    %v298 = vld [vmem:[#allocation4 + $0xb4] sm:$0xff]
    %v299 = vld [vmem:[#allocation4 + $0xbc] sm:$0xf]
    %v300 = vld [vmem:[#allocation4 + $0xc0] sm:$0xff]
    %v301 = vld [vmem:[#allocation4 + $0xc8] sm:$0xf]
    %v302 = vld [vmem:[#allocation4 + $0xcc] sm:$0xff]
    %v303 = vld [vmem:[#allocation4 + $0xd4] sm:$0xf]
    %v304 = vld [vmem:[#allocation4 + $0xd8] sm:$0xff]
    %v305 = vld [vmem:[#allocation4 + $0xe0] sm:$0xf]
    %v306 = vld [vmem:[#allocation4 + $0xe4] sm:$0xff]
    %v307 = vld [vmem:[#allocation4 + $0xec] sm:$0xf]
    %v308 = vld [vmem:[#allocation4 + $0xf0] sm:$0xff]
    %v309 = vld [vmem:[#allocation4 + $0xf8] sm:$0xf]
    %v310 = vld [vmem:[#allocation4 + $0xfc] sm:$0xff]
    %v311 = vld [vmem:[#allocation4 + $0x104] sm:$0xf]
    %v312 = vld [vmem:[#allocation4 + $0x108] sm:$0xff]
    %v313 = vld [vmem:[#allocation4 + $0x110] sm:$0xf]
    %v314 = vld [vmem:[#allocation4 + $0x114] sm:$0xff]
    %v315 = vld [vmem:[#allocation4 + $0x11c] sm:$0xf]
    %v316 = vld [vmem:[#allocation4 + $0x120] sm:$0xff]
    %v317 = vld [vmem:[#allocation4 + $0x128] sm:$0xf]
    %v318 = vld [vmem:[#allocation4 + $0x12c] sm:$0xff]
    %v319 = vld [vmem:[#allocation4 + $0x134] sm:$0xf]
    %v320 = vld [vmem:[#allocation4 + $0x138] sm:$0xff]
    %v321 = vld [vmem:[#allocation4 + $0x140] sm:$0xf]
    %v322 = vld [vmem:[#allocation4 + $0x144] sm:$0xff]
    %v323 = vld [vmem:[#allocation4 + $0x14c] sm:$0xf]
    %v324 = vld [vmem:[#allocation4 + $0x150] sm:$0xff]
    %v325 = vld [vmem:[#allocation4 + $0x158] sm:$0xf]
    %v326 = vld [vmem:[#allocation4 + $0x15c] sm:$0xff]
    %v327 = vld [vmem:[#allocation4 + $0x164] sm:$0xf]
    %v328 = vld [vmem:[#allocation4 + $0x168] sm:$0xff]
    %v329 = vld [vmem:[#allocation4 + $0x170] sm:$0xf]
    %v330 = vld [vmem:[#allocation4 + $0x174] sm:$0xff]
    %v331 = vld [vmem:[#allocation4 + $0x17c] sm:$0xf]
    %v332 = vld [vmem:[#allocation4 + $0x180] sm:$0xff]
    %v333 = vld [vmem:[#allocation4 + $0x188] sm:$0xf]
    %v334 = vld [vmem:[#allocation4 + $0x18c] sm:$0xff]
    %v335 = vld [vmem:[#allocation4 + $0x194] sm:$0xf]
    %v336 = vld [vmem:[#allocation4 + $0x198] sm:$0xff]
    %v337 = vld [vmem:[#allocation4 + $0x1a0] sm:$0xf]
    %v338 = vld [vmem:[#allocation4 + $0x1a4] sm:$0xff]
    %v339 = vld [vmem:[#allocation4 + $0x1ac] sm:$0xf]
    %v340 = vld [vmem:[#allocation4 + $0x1b0] sm:$0xff]
    %v341 = vld [vmem:[#allocation4 + $0x1b8] sm:$0xf]
    %v342 = vld [vmem:[#allocation4 + $0x1bc] sm:$0xff]
    %v343 = vld [vmem:[#allocation4 + $0x1c4] sm:$0xf]
    %v344 = vld [vmem:[#allocation4 + $0x1c8] sm:$0xff]
    %v345 = vld [vmem:[#allocation4 + $0x1d0] sm:$0xf]
    %v346 = vld [vmem:[#allocation4 + $0x1d4] sm:$0xff]
    %v347 = vld [vmem:[#allocation4 + $0x1dc] sm:$0xf]
    %v348 = vld [vmem:[#allocation4 + $0x1e0] sm:$0xff]
    %v349 = vld [vmem:[#allocation4 + $0x1e8] sm:$0xf]
    %v350 = vld [vmem:[#allocation4 + $0x1ec] sm:$0xff]
    %v351 = vld [vmem:[#allocation4 + $0x1f4] sm:$0xf]
    %v352 = vld [vmem:[#allocation4 + $0x1f8] sm:$0xff]
    %v353 = vld [vmem:[#allocation4 + $0x200] sm:$0xf]
    %v354 = vld [vmem:[#allocation4 + $0x204] sm:$0xff]
    %v355 = vld [vmem:[#allocation4 + $0x20c] sm:$0xf]
    %v356 = vld [vmem:[#allocation4 + $0x210] sm:$0xff]
    %v357 = vld [vmem:[#allocation4 + $0x218] sm:$0xf]
    %v358 = vld [vmem:[#allocation4 + $0x21c] sm:$0xff]
    %v359 = vld [vmem:[#allocation4 + $0x224] sm:$0xf]
    %v360 = vld [vmem:[#allocation4 + $0x228] sm:$0xff]
    %v361 = vld [vmem:[#allocation4 + $0x230] sm:$0xf]
    %v362 = vld [vmem:[#allocation4 + $0x234] sm:$0xff]
    %v363 = vld [vmem:[#allocation4 + $0x23c] sm:$0xf]
    %v364 = vld [vmem:[#allocation4 + $0x240] sm:$0xff]
    %v365 = vld [vmem:[#allocation4 + $0x248] sm:$0xf]
    %v366 = vld [vmem:[#allocation4 + $0x24c] sm:$0xff]
    %v367 = vld [vmem:[#allocation4 + $0x254] sm:$0xf]
    %v368 = vld [vmem:[#allocation4 + $0x258] sm:$0xff]
    %v369 = vld [vmem:[#allocation4 + $0x260] sm:$0xf]
    %v370 = vld [vmem:[#allocation4 + $0x264] sm:$0xff]
    %v371 = vld [vmem:[#allocation4 + $0x26c] sm:$0xf]
    %v372 = vld [vmem:[#allocation4 + $0x270] sm:$0xff]
    %v373 = vld [vmem:[#allocation4 + $0x278] sm:$0xf]
    %v374 = vld [vmem:[#allocation4 + $0x27c] sm:$0xff]
    %v375 = vld [vmem:[#allocation4 + $0x284] sm:$0xf]
    %v376 = vld [vmem:[#allocation4 + $0x288] sm:$0xff]
    %v377 = vld [vmem:[#allocation4 + $0x290] sm:$0xf]
    %v378 = vld [vmem:[#allocation4 + $0x294] sm:$0xff]
    %v379 = vld [vmem:[#allocation4 + $0x29c] sm:$0xf]
    %v380 = vld [vmem:[#allocation4 + $0x2a0] sm:$0xff]
    %v381 = vld [vmem:[#allocation4 + $0x2a8] sm:$0xf]
    %v382 = vld [vmem:[#allocation4 + $0x2ac] sm:$0xff]
    %v383 = vld [vmem:[#allocation4 + $0x2b4] sm:$0xf]
    %v384 = vld [vmem:[#allocation4 + $0x2b8] sm:$0xff]
    %v385 = vld [vmem:[#allocation4 + $0x2c0] sm:$0xf]
    %v386 = vld [vmem:[#allocation4 + $0x2c4] sm:$0xff]
    %v387 = vld [vmem:[#allocation4 + $0x2cc] sm:$0xf]
    %v388 = vld [vmem:[#allocation4 + $0x2d0] sm:$0xff]
    %v389 = vld [vmem:[#allocation4 + $0x2d8] sm:$0xf]
    %v390 = vld [vmem:[#allocation4 + $0x2dc] sm:$0xff]
    %v391 = vld [vmem:[#allocation4 + $0x2e4] sm:$0xf]
    %v392 = vld [vmem:[#allocation4 + $0x2e8] sm:$0xff]
    %v393 = vld [vmem:[#allocation4 + $0x2f0] sm:$0xf]
    %v394 = vld [vmem:[#allocation4 + $0x2f4] sm:$0xff]
    %v395 = vld [vmem:[#allocation4 + $0x2fc] sm:$0xf]
    %v396 = vld [vmem:[%s4] sm:$0x7]
    %v398 = vlaneseq
    %v399 = vshrl.u32 %v398, 7
    %v400 = vsub.s32 0, %v399
    %v401 = vrot.slane %v396, %v400
    %v402 = vlaneseq
    %v403 = vshrl.u32 %v402, 7
    %v404 = vsub.s32 1, %v403
    %v405 = vrot.slane %v396, %v404
    %v406 = vlaneseq
    %v407 = vshrl.u32 %v406, 7
    %v408 = vsub.s32 2, %v407
    %v409 = vrot.slane %v396, %v408
    %v541 = vunpack.c.l.b16 %v268
    %v542 = vunpack.c.h.b16 %v268
    %v543 = vunpack.c.l.b16 %v269
    %v544 = vunpack.c.l.b16 %v270
    %v545 = vunpack.c.h.b16 %v270
    %v546 = vunpack.c.l.b16 %v271
    %v547 = vunpack.c.l.b16 %v272
    %v548 = vunpack.c.h.b16 %v272
    %v549 = vunpack.c.l.b16 %v273
    %v550 = vunpack.c.l.b16 %v274
    %v551 = vunpack.c.h.b16 %v274
    %v552 = vunpack.c.l.b16 %v275
    %v553 = vunpack.c.l.b16 %v276
    %v554 = vunpack.c.h.b16 %v276
    %v555 = vunpack.c.l.b16 %v277
    %v556 = vunpack.c.l.b16 %v278
    %v557 = vunpack.c.h.b16 %v278
    %v558 = vunpack.c.l.b16 %v279
    %v559 = vunpack.c.l.b16 %v280
    %v560 = vunpack.c.h.b16 %v280
    %v561 = vunpack.c.l.b16 %v281
    %v562 = vunpack.c.l.b16 %v282
    %v563 = vunpack.c.h.b16 %v282
    %v564 = vunpack.c.l.b16 %v283
    %v565 = vunpack.c.l.b16 %v284
    %v566 = vunpack.c.h.b16 %v284
    %v567 = vunpack.c.l.b16 %v285
    %v568 = vunpack.c.l.b16 %v286
    %v569 = vunpack.c.h.b16 %v286
    %v570 = vunpack.c.l.b16 %v287
    %v571 = vunpack.c.l.b16 %v288
    %v572 = vunpack.c.h.b16 %v288
    %v573 = vunpack.c.l.b16 %v289
    %v574 = vunpack.c.l.b16 %v290
    %v575 = vunpack.c.h.b16 %v290
    %v576 = vunpack.c.l.b16 %v291
    %v577 = vunpack.c.l.b16 %v292
    %v578 = vunpack.c.h.b16 %v292
    %v579 = vunpack.c.l.b16 %v293
    %v580 = vunpack.c.l.b16 %v294
    %v581 = vunpack.c.h.b16 %v294
    %v582 = vunpack.c.l.b16 %v295
    %v583 = vunpack.c.l.b16 %v296
    %v584 = vunpack.c.h.b16 %v296
    %v585 = vunpack.c.l.b16 %v297
    %v586 = vunpack.c.l.b16 %v298
    %v587 = vunpack.c.h.b16 %v298
    %v588 = vunpack.c.l.b16 %v299
    %v589 = vunpack.c.l.b16 %v300
    %v590 = vunpack.c.h.b16 %v300
    %v591 = vunpack.c.l.b16 %v301
    %v592 = vunpack.c.l.b16 %v302
    %v593 = vunpack.c.h.b16 %v302
    %v594 = vunpack.c.l.b16 %v303
    %v595 = vunpack.c.l.b16 %v304
    %v596 = vunpack.c.h.b16 %v304
    %v597 = vunpack.c.l.b16 %v305
    %v598 = vunpack.c.l.b16 %v306
    %v599 = vunpack.c.h.b16 %v306
    %v600 = vunpack.c.l.b16 %v307
    %v601 = vunpack.c.l.b16 %v308
    %v602 = vunpack.c.h.b16 %v308
    %v603 = vunpack.c.l.b16 %v309
    %v604 = vunpack.c.l.b16 %v310
    %v605 = vunpack.c.h.b16 %v310
    %v606 = vunpack.c.l.b16 %v311
    %v607 = vunpack.c.l.b16 %v312
    %v608 = vunpack.c.h.b16 %v312
    %v609 = vunpack.c.l.b16 %v313
    %v610 = vunpack.c.l.b16 %v314
    %v611 = vunpack.c.h.b16 %v314
    %v612 = vunpack.c.l.b16 %v315
    %v613 = vunpack.c.l.b16 %v316
    %v614 = vunpack.c.h.b16 %v316
    %v615 = vunpack.c.l.b16 %v317
    %v616 = vunpack.c.l.b16 %v318
    %v617 = vunpack.c.h.b16 %v318
    %v618 = vunpack.c.l.b16 %v319
    %v619 = vunpack.c.l.b16 %v320
    %v620 = vunpack.c.h.b16 %v320
    %v621 = vunpack.c.l.b16 %v321
    %v622 = vunpack.c.l.b16 %v322
    %v623 = vunpack.c.h.b16 %v322
    %v624 = vunpack.c.l.b16 %v323
    %v625 = vunpack.c.l.b16 %v324
    %v626 = vunpack.c.h.b16 %v324
    %v627 = vunpack.c.l.b16 %v325
    %v628 = vunpack.c.l.b16 %v326
    %v629 = vunpack.c.h.b16 %v326
    %v630 = vunpack.c.l.b16 %v327
    %v631 = vunpack.c.l.b16 %v328
    %v632 = vunpack.c.h.b16 %v328
    %v633 = vunpack.c.l.b16 %v329
    %v634 = vunpack.c.l.b16 %v330
    %v635 = vunpack.c.h.b16 %v330
    %v636 = vunpack.c.l.b16 %v331
    %v637 = vunpack.c.l.b16 %v332
    %v638 = vunpack.c.h.b16 %v332
    %v639 = vunpack.c.l.b16 %v333
    %v640 = vunpack.c.l.b16 %v334
    %v641 = vunpack.c.h.b16 %v334
    %v642 = vunpack.c.l.b16 %v335
    %v643 = vunpack.c.l.b16 %v336
    %v644 = vunpack.c.h.b16 %v336
    %v645 = vunpack.c.l.b16 %v337
    %v646 = vunpack.c.l.b16 %v338
    %v647 = vunpack.c.h.b16 %v338
    %v648 = vunpack.c.l.b16 %v339
    %v649 = vunpack.c.l.b16 %v340
    %v650 = vunpack.c.h.b16 %v340
    %v651 = vunpack.c.l.b16 %v341
    %v652 = vunpack.c.l.b16 %v342
    %v653 = vunpack.c.h.b16 %v342
    %v654 = vunpack.c.l.b16 %v343
    %v655 = vunpack.c.l.b16 %v344
    %v656 = vunpack.c.h.b16 %v344
    %v657 = vunpack.c.l.b16 %v345
    %v658 = vunpack.c.l.b16 %v346
    %v659 = vunpack.c.h.b16 %v346
    %v660 = vunpack.c.l.b16 %v347
    %v661 = vunpack.c.l.b16 %v348
    %v662 = vunpack.c.h.b16 %v348
    %v663 = vunpack.c.l.b16 %v349
    %v664 = vunpack.c.l.b16 %v350
    %v665 = vunpack.c.h.b16 %v350
    %v666 = vunpack.c.l.b16 %v351
    %v667 = vunpack.c.l.b16 %v352
    %v668 = vunpack.c.h.b16 %v352
    %v669 = vunpack.c.l.b16 %v353
    %v670 = vunpack.c.l.b16 %v354
    %v671 = vunpack.c.h.b16 %v354
    %v672 = vunpack.c.l.b16 %v355
    %v673 = vunpack.c.l.b16 %v356
    %v674 = vunpack.c.h.b16 %v356
    %v675 = vunpack.c.l.b16 %v357
    %v676 = vunpack.c.l.b16 %v358
    %v677 = vunpack.c.h.b16 %v358
    %v678 = vunpack.c.l.b16 %v359
    %v679 = vunpack.c.l.b16 %v360
    %v680 = vunpack.c.h.b16 %v360
    %v681 = vunpack.c.l.b16 %v361
    %v682 = vunpack.c.l.b16 %v362
    %v683 = vunpack.c.h.b16 %v362
    %v684 = vunpack.c.l.b16 %v363
    %v685 = vunpack.c.l.b16 %v364
    %v686 = vunpack.c.h.b16 %v364
    %v687 = vunpack.c.l.b16 %v365
    %v688 = vunpack.c.l.b16 %v366
    %v689 = vunpack.c.h.b16 %v366
    %v690 = vunpack.c.l.b16 %v367
    %v691 = vunpack.c.l.b16 %v368
    %v692 = vunpack.c.h.b16 %v368
    %v693 = vunpack.c.l.b16 %v369
    %v694 = vunpack.c.l.b16 %v370
    %v695 = vunpack.c.h.b16 %v370
    %v696 = vunpack.c.l.b16 %v371
    %v697 = vunpack.c.l.b16 %v372
    %v698 = vunpack.c.h.b16 %v372
    %v699 = vunpack.c.l.b16 %v373
    %v700 = vunpack.c.l.b16 %v374
    %v701 = vunpack.c.h.b16 %v374
    %v702 = vunpack.c.l.b16 %v375
    %v703 = vunpack.c.l.b16 %v376
    %v704 = vunpack.c.h.b16 %v376
    %v705 = vunpack.c.l.b16 %v377
    %v706 = vunpack.c.l.b16 %v378
    %v707 = vunpack.c.h.b16 %v378
    %v708 = vunpack.c.l.b16 %v379
    %v709 = vunpack.c.l.b16 %v380
    %v710 = vunpack.c.h.b16 %v380
    %v711 = vunpack.c.l.b16 %v381
    %v712 = vunpack.c.l.b16 %v382
    %v713 = vunpack.c.h.b16 %v382
    %v714 = vunpack.c.l.b16 %v383
    %v715 = vunpack.c.l.b16 %v384
    %v716 = vunpack.c.h.b16 %v384
    %v717 = vunpack.c.l.b16 %v385
    %v718 = vunpack.c.l.b16 %v386
    %v719 = vunpack.c.h.b16 %v386
    %v720 = vunpack.c.l.b16 %v387
    %v721 = vunpack.c.l.b16 %v388
    %v722 = vunpack.c.h.b16 %v388
    %v723 = vunpack.c.l.b16 %v389
    %v724 = vunpack.c.l.b16 %v390
    %v725 = vunpack.c.h.b16 %v390
    %v726 = vunpack.c.l.b16 %v391
    %v727 = vunpack.c.l.b16 %v392
    %v728 = vunpack.c.h.b16 %v392
    %v729 = vunpack.c.l.b16 %v393
    %v730 = vunpack.c.l.b16 %v394
    %v731 = vunpack.c.h.b16 %v394
    %v732 = vunpack.c.l.b16 %v395
    %v733 = vpack.c.b16 %v544, %v541
    %v734 = vpack.c.b16 %v545, %v542
    %v735 = vpack.c.b16 %v546, %v543
    %v736 = vpack.c.b16 %v550, %v547
    %v737 = vpack.c.b16 %v551, %v548
    %v738 = vpack.c.b16 %v552, %v549
    %v739 = vpack.c.b16 %v556, %v553
    %v740 = vpack.c.b16 %v557, %v554
    %v741 = vpack.c.b16 %v558, %v555
    %v742 = vpack.c.b16 %v562, %v559
    %v743 = vpack.c.b16 %v563, %v560
    %v744 = vpack.c.b16 %v564, %v561
    %v745 = vpack.c.b16 %v568, %v565
    %v746 = vpack.c.b16 %v569, %v566
    %v747 = vpack.c.b16 %v570, %v567
    %v748 = vpack.c.b16 %v574, %v571
    %v749 = vpack.c.b16 %v575, %v572
    %v750 = vpack.c.b16 %v576, %v573
    %v751 = vpack.c.b16 %v580, %v577
    %v752 = vpack.c.b16 %v581, %v578
    %v753 = vpack.c.b16 %v582, %v579
    %v754 = vpack.c.b16 %v586, %v583
    %v755 = vpack.c.b16 %v587, %v584
    %v756 = vpack.c.b16 %v588, %v585
    %v757 = vpack.c.b16 %v592, %v589
    %v758 = vpack.c.b16 %v593, %v590
    %v759 = vpack.c.b16 %v594, %v591
    %v760 = vpack.c.b16 %v598, %v595
    %v761 = vpack.c.b16 %v599, %v596
    %v762 = vpack.c.b16 %v600, %v597
    %v763 = vpack.c.b16 %v604, %v601
    %v764 = vpack.c.b16 %v605, %v602
    %v765 = vpack.c.b16 %v606, %v603
    %v766 = vpack.c.b16 %v610, %v607
    %v767 = vpack.c.b16 %v611, %v608
    %v768 = vpack.c.b16 %v612, %v609
    %v769 = vpack.c.b16 %v616, %v613
    %v770 = vpack.c.b16 %v617, %v614
    %v771 = vpack.c.b16 %v618, %v615
    %v772 = vpack.c.b16 %v622, %v619
    %v773 = vpack.c.b16 %v623, %v620
    %v774 = vpack.c.b16 %v624, %v621
    %v775 = vpack.c.b16 %v628, %v625
    %v776 = vpack.c.b16 %v629, %v626
    %v777 = vpack.c.b16 %v630, %v627
    %v778 = vpack.c.b16 %v634, %v631
    %v779 = vpack.c.b16 %v635, %v632
    %v780 = vpack.c.b16 %v636, %v633
    %v781 = vpack.c.b16 %v640, %v637
    %v782 = vpack.c.b16 %v641, %v638
    %v783 = vpack.c.b16 %v642, %v639
    %v784 = vpack.c.b16 %v646, %v643
    %v785 = vpack.c.b16 %v647, %v644
    %v786 = vpack.c.b16 %v648, %v645
    %v787 = vpack.c.b16 %v652, %v649
    %v788 = vpack.c.b16 %v653, %v650
    %v789 = vpack.c.b16 %v654, %v651
    %v790 = vpack.c.b16 %v658, %v655
    %v791 = vpack.c.b16 %v659, %v656
    %v792 = vpack.c.b16 %v660, %v657
    %v793 = vpack.c.b16 %v664, %v661
    %v794 = vpack.c.b16 %v665, %v662
    %v795 = vpack.c.b16 %v666, %v663
    %v796 = vpack.c.b16 %v670, %v667
    %v797 = vpack.c.b16 %v671, %v668
    %v798 = vpack.c.b16 %v672, %v669
    %v799 = vpack.c.b16 %v676, %v673
    %v800 = vpack.c.b16 %v677, %v674
    %v801 = vpack.c.b16 %v678, %v675
    %v802 = vpack.c.b16 %v682, %v679
    %v803 = vpack.c.b16 %v683, %v680
    %v804 = vpack.c.b16 %v684, %v681
    %v805 = vpack.c.b16 %v688, %v685
    %v806 = vpack.c.b16 %v689, %v686
    %v807 = vpack.c.b16 %v690, %v687
    %v808 = vpack.c.b16 %v694, %v691
    %v809 = vpack.c.b16 %v695, %v692
    %v810 = vpack.c.b16 %v696, %v693
    %v811 = vpack.c.b16 %v700, %v697
    %v812 = vpack.c.b16 %v701, %v698
    %v813 = vpack.c.b16 %v702, %v699
    %v814 = vpack.c.b16 %v706, %v703
    %v815 = vpack.c.b16 %v707, %v704
    %v816 = vpack.c.b16 %v708, %v705
    %v817 = vpack.c.b16 %v712, %v709
    %v818 = vpack.c.b16 %v713, %v710
    %v819 = vpack.c.b16 %v714, %v711
    %v820 = vpack.c.b16 %v718, %v715
    %v821 = vpack.c.b16 %v719, %v716
    %v822 = vpack.c.b16 %v720, %v717
    %v823 = vpack.c.b16 %v724, %v721
    %v824 = vpack.c.b16 %v725, %v722
    %v825 = vpack.c.b16 %v726, %v723
    %v826 = vpack.c.b16 %v730, %v727
    %v827 = vpack.c.b16 %v731, %v728
    %v828 = vpack.c.b16 %v732, %v729
    %925 = vmatprep.subr.bf16.mxu0 %v734
    %926 = vmatpush1.bf16.msra.mxu0 %v733
    %927 = vmatprep.subr.bf16.mxu0 %v737
    %928 = vmatpush1.bf16.msra.mxu0 %v736
    %929 = vmatprep.subr.bf16.mxu0 %v740
    %930 = vmatpush1.bf16.msra.mxu0 %v739
    %931 = vmatprep.subr.bf16.mxu0 %v743
    %932 = vmatpush1.bf16.msra.mxu0 %v742
    %933 = vmatprep.subr.bf16.mxu0 %v746
    %934 = vmatpush1.bf16.msra.mxu0 %v745
    %935 = vmatprep.subr.bf16.mxu0 %v749
    %936 = vmatpush1.bf16.msra.mxu0 %v748
    %937 = vmatprep.subr.bf16.mxu0 %v752
    %938 = vmatpush1.bf16.msra.mxu0 %v751
    %939 = vmatprep.subr.bf16.mxu0 %v755
    %940 = vmatpush1.bf16.msra.mxu0 %v754
    %941 = vmatprep.subr.bf16.mxu0 %v758
    %942 = vmatpush1.bf16.msra.mxu0 %v757
    %943 = vmatprep.subr.bf16.mxu0 %v761
    %944 = vmatpush1.bf16.msra.mxu0 %v760
    %945 = vmatprep.subr.bf16.mxu0 %v764
    %946 = vmatpush1.bf16.msra.mxu0 %v763
    %947 = vmatprep.subr.bf16.mxu0 %v767
    %948 = vmatpush1.bf16.msra.mxu0 %v766
    %949 = vmatprep.subr.bf16.mxu0 %v770
    %950 = vmatpush1.bf16.msra.mxu0 %v769
    %951 = vmatprep.subr.bf16.mxu0 %v773
    %952 = vmatpush1.bf16.msra.mxu0 %v772
    %953 = vmatprep.subr.bf16.mxu0 %v776
    %954 = vmatpush1.bf16.msra.mxu0 %v775
    %955 = vmatprep.subr.bf16.mxu0 %v779
    %956 = vmatpush1.bf16.msra.mxu0 %v778
    %957 = vmatprep.mubr.bf16.mxu0 %v265
    %958 = vmatmul.mubr.bf16.gmra.mrb[0].mxu0 %v264
    %v959 = vpop.f32.mrb[0].mxu0
    %v960 = vadd.f32 %v401, %v959
    %v961 = vpop.f32.mrb[0].mxu0
    %v962 = vadd.f32 %v405, %v961
    %v963 = vpop.f32.mrb[0].mxu0
    %v964 = vpop.f32.mrb[0].mxu0
    %965 = vdwg.mxu0
    %966 = vmatprep.subr.bf16.mxu0 %v782
    %967 = vmatpush1.bf16.msra.mxu0 %v781
    %968 = vmatprep.subr.bf16.mxu0 %v785
    %969 = vmatpush1.bf16.msra.mxu0 %v784
    %970 = vmatprep.subr.bf16.mxu0 %v788
    %971 = vmatpush1.bf16.msra.mxu0 %v787
    %972 = vmatprep.subr.bf16.mxu0 %v791
    %973 = vmatpush1.bf16.msra.mxu0 %v790
    %974 = vmatprep.subr.bf16.mxu0 %v794
    %975 = vmatpush1.bf16.msra.mxu0 %v793
    %976 = vmatprep.subr.bf16.mxu0 %v797
    %977 = vmatpush1.bf16.msra.mxu0 %v796
    %978 = vmatprep.subr.bf16.mxu0 %v800
    %979 = vmatpush1.bf16.msra.mxu0 %v799
    %980 = vmatprep.subr.bf16.mxu0 %v803
    %981 = vmatpush1.bf16.msra.mxu0 %v802
    %982 = vmatprep.subr.bf16.mxu0 %v806
    %983 = vmatpush1.bf16.msra.mxu0 %v805
    %984 = vmatprep.subr.bf16.mxu0 %v809
    %985 = vmatpush1.bf16.msra.mxu0 %v808
    %986 = vmatprep.subr.bf16.mxu0 %v812
    %987 = vmatpush1.bf16.msra.mxu0 %v811
    %988 = vmatprep.subr.bf16.mxu0 %v815
    %989 = vmatpush1.bf16.msra.mxu0 %v814
    %990 = vmatprep.subr.bf16.mxu0 %v818
    %991 = vmatpush1.bf16.msra.mxu0 %v817
    %992 = vmatprep.subr.bf16.mxu0 %v821
    %993 = vmatpush1.bf16.msra.mxu0 %v820
    %994 = vmatprep.subr.bf16.mxu0 %v824
    %995 = vmatpush1.bf16.msra.mxu0 %v823
    %996 = vmatprep.subr.bf16.mxu0 %v827
    %997 = vmatpush1.bf16.msra.mxu0 %v826
    %998 = vmatprep.mubr.bf16.mxu0 %v267
    %999 = vmatmul.mubr.bf16.gmra.mrb[0].mxu0 %v266
    %v1000 = vpop.f32.mrb[0].mxu0
    %v1001 = vadd.f32 %v960, %v1000
    %v1002 = vpop.f32.mrb[0].mxu0
    %v1003 = vadd.f32 %v962, %v1002
    %v1004 = vpop.f32.mrb[0].mxu0
    %v1005 = vpop.f32.mrb[0].mxu0
    %1006 = vdwg.mxu0
    %1007 = vmatprep.subr.bf16.mxu0 0
    %1008 = vmatpush1.bf16.msra.mxu0 %v735
    %1009 = vmatprep.subr.bf16.mxu0 0
    %1010 = vmatpush1.bf16.msra.mxu0 %v738
    %1011 = vmatprep.subr.bf16.mxu0 0
    %1012 = vmatpush1.bf16.msra.mxu0 %v741
    %1013 = vmatprep.subr.bf16.mxu0 0
    %1014 = vmatpush1.bf16.msra.mxu0 %v744
    %1015 = vmatprep.subr.bf16.mxu0 0
    %1016 = vmatpush1.bf16.msra.mxu0 %v747
    %1017 = vmatprep.subr.bf16.mxu0 0
    %1018 = vmatpush1.bf16.msra.mxu0 %v750
    %1019 = vmatprep.subr.bf16.mxu0 0
    %1020 = vmatpush1.bf16.msra.mxu0 %v753
    %1021 = vmatprep.subr.bf16.mxu0 0
    %1022 = vmatpush1.bf16.msra.mxu0 %v756
    %1023 = vmatprep.subr.bf16.mxu0 0
    %1024 = vmatpush1.bf16.msra.mxu0 %v759
    %1025 = vmatprep.subr.bf16.mxu0 0
    %1026 = vmatpush1.bf16.msra.mxu0 %v762
    %1027 = vmatprep.subr.bf16.mxu0 0
    %1028 = vmatpush1.bf16.msra.mxu0 %v765
    %1029 = vmatprep.subr.bf16.mxu0 0
    %1030 = vmatpush1.bf16.msra.mxu0 %v768
    %1031 = vmatprep.subr.bf16.mxu0 0
    %1032 = vmatpush1.bf16.msra.mxu0 %v771
    %1033 = vmatprep.subr.bf16.mxu0 0
    %1034 = vmatpush1.bf16.msra.mxu0 %v774
    %1035 = vmatprep.subr.bf16.mxu0 0
    %1036 = vmatpush1.bf16.msra.mxu0 %v777
    %1037 = vmatprep.subr.bf16.mxu0 0
    %1038 = vmatpush1.bf16.msra.mxu0 %v780
    %1039 = vmatprep.mubr.bf16.mxu0 %v265
    %1040 = vmatmul.mubr.bf16.gmra.mrb[0].mxu0 %v264
    %v1041 = vpop.f32.mrb[0].mxu0
    %v1042 = vadd.f32 %v409, %v1041
    %v1043 = vpop.f32.mrb[0].mxu0
    %v1044 = vpop.f32.mrb[0].mxu0
    %v1045 = vpop.f32.mrb[0].mxu0
    %1046 = vdwg.mxu0
    %1047 = vmatprep.subr.bf16.mxu0 0
    %1048 = vmatpush1.bf16.msra.mxu0 %v783
    %1049 = vmatprep.subr.bf16.mxu0 0
    %1050 = vmatpush1.bf16.msra.mxu0 %v786
    %1051 = vmatprep.subr.bf16.mxu0 0
    %1052 = vmatpush1.bf16.msra.mxu0 %v789
    %1053 = vmatprep.subr.bf16.mxu0 0
    %1054 = vmatpush1.bf16.msra.mxu0 %v792
    %1055 = vmatprep.subr.bf16.mxu0 0
    %1056 = vmatpush1.bf16.msra.mxu0 %v795
    %1057 = vmatprep.subr.bf16.mxu0 0
    %1058 = vmatpush1.bf16.msra.mxu0 %v798
    %1059 = vmatprep.subr.bf16.mxu0 0
    %1060 = vmatpush1.bf16.msra.mxu0 %v801
    %1061 = vmatprep.subr.bf16.mxu0 0
    %1062 = vmatpush1.bf16.msra.mxu0 %v804
    %1063 = vmatprep.subr.bf16.mxu0 0
    %1064 = vmatpush1.bf16.msra.mxu0 %v807
    %1065 = vmatprep.subr.bf16.mxu0 0
    %1066 = vmatpush1.bf16.msra.mxu0 %v810
    %1067 = vmatprep.subr.bf16.mxu0 0
    %1068 = vmatpush1.bf16.msra.mxu0 %v813
    %1069 = vmatprep.subr.bf16.mxu0 0
    %1070 = vmatpush1.bf16.msra.mxu0 %v816
    %1071 = vmatprep.subr.bf16.mxu0 0
    %1072 = vmatpush1.bf16.msra.mxu0 %v819
    %1073 = vmatprep.subr.bf16.mxu0 0
    %1074 = vmatpush1.bf16.msra.mxu0 %v822
    %1075 = vmatprep.subr.bf16.mxu0 0
    %1076 = vmatpush1.bf16.msra.mxu0 %v825
    %1077 = vmatprep.subr.bf16.mxu0 0
    %1078 = vmatpush1.bf16.msra.mxu0 %v828
    %1079 = vmatprep.mubr.bf16.mxu0 %v267
    %1080 = vmatmul.mubr.bf16.gmra.mrb[0].mxu0 %v266
    %v1081 = vpop.f32.mrb[0].mxu0
    %v1082 = vadd.f32 %v1042, %v1081
    %v1083 = vpop.f32.mrb[0].mxu0
    %v1084 = vpop.f32.mrb[0].mxu0
    %v1085 = vpop.f32.mrb[0].mxu0
    %1086 = vdwg.mxu0
    %v1087 = vmax.f32 %v1001, 0.0
    %v1088 = vmax.f32 %v1003, 0.0
    %v1089 = vmax.f32 %v1082, 0.0
    %v1090 = vpack.c.bf16 %v1087, %v1087
    %v1091 = vpack.c.bf16 %v1088, %v1088
    %v1092 = vpack.c.bf16 %v1089, %v1089
    %v1093 = vld [vmem:[#allocation6] sm:$0xff]
    %v1094 = vld [vmem:[#allocation6 + $0x8] sm:$0xff]
    %v1095 = vld [vmem:[#allocation6 + $0x10] sm:$0xff]
    %v1096 = vld [vmem:[#allocation6 + $0x18] sm:$0xff]
    %v1097 = vld [vmem:[#allocation6 + $0x20] sm:$0xff]
    %v1098 = vld [vmem:[#allocation6 + $0x28] sm:$0xff]
    %v1099 = vld [vmem:[#allocation6 + $0x30] sm:$0xff]
    %v1100 = vld [vmem:[#allocation6 + $0x38] sm:$0xff]
    %v1101 = vld [vmem:[#allocation6 + $0x40] sm:$0xff]
    %v1102 = vld [vmem:[#allocation6 + $0x48] sm:$0xff]
    %v1103 = vld [vmem:[#allocation6 + $0x50] sm:$0xff]
    %v1104 = vld [vmem:[#allocation6 + $0x58] sm:$0xff]
    %v1105 = vld [vmem:[#allocation6 + $0x60] sm:$0xff]
    %v1106 = vld [vmem:[#allocation6 + $0x68] sm:$0xff]
    %v1107 = vld [vmem:[#allocation6 + $0x70] sm:$0xff]
    %v1108 = vld [vmem:[#allocation6 + $0x78] sm:$0xff]
    %v1109 = vld [vmem:[#allocation6 + $0x80] sm:$0xff]
    %v1110 = vld [vmem:[#allocation6 + $0x88] sm:$0xff]
    %v1111 = vld [vmem:[#allocation6 + $0x90] sm:$0xff]
    %v1112 = vld [vmem:[#allocation6 + $0x98] sm:$0xff]
    %v1113 = vld [vmem:[#allocation6 + $0xa0] sm:$0xff]
    %v1114 = vld [vmem:[#allocation6 + $0xa8] sm:$0xff]
    %v1115 = vld [vmem:[#allocation6 + $0xb0] sm:$0xff]
    %v1116 = vld [vmem:[#allocation6 + $0xb8] sm:$0xff]
    %v1117 = vld [vmem:[#allocation6 + $0xc0] sm:$0xff]
    %v1118 = vld [vmem:[#allocation6 + $0xc8] sm:$0xff]
    %v1119 = vld [vmem:[#allocation6 + $0xd0] sm:$0xff]
    %v1120 = vld [vmem:[#allocation6 + $0xd8] sm:$0xff]
    %v1121 = vld [vmem:[#allocation6 + $0xe0] sm:$0xff]
    %v1122 = vld [vmem:[#allocation6 + $0xe8] sm:$0xff]
    %v1123 = vld [vmem:[#allocation6 + $0xf0] sm:$0xff]
    %v1124 = vld [vmem:[#allocation6 + $0xf8] sm:$0xff]
    %v1125 = vld [vmem:[#allocation6 + $0x100] sm:$0xff]
    %v1126 = vld [vmem:[#allocation6 + $0x108] sm:$0xff]
    %v1127 = vld [vmem:[#allocation6 + $0x110] sm:$0xff]
    %v1128 = vld [vmem:[#allocation6 + $0x118] sm:$0xff]
    %v1129 = vld [vmem:[#allocation6 + $0x120] sm:$0xff]
    %v1130 = vld [vmem:[#allocation6 + $0x128] sm:$0xff]
    %v1131 = vld [vmem:[#allocation6 + $0x130] sm:$0xff]
    %v1132 = vld [vmem:[#allocation6 + $0x138] sm:$0xff]
    %v1133 = vld [vmem:[#allocation6 + $0x140] sm:$0xff]
    %v1134 = vld [vmem:[#allocation6 + $0x148] sm:$0xff]
    %v1135 = vld [vmem:[#allocation6 + $0x150] sm:$0xff]
    %v1136 = vld [vmem:[#allocation6 + $0x158] sm:$0xff]
    %v1137 = vld [vmem:[#allocation6 + $0x160] sm:$0xff]
    %v1138 = vld [vmem:[#allocation6 + $0x168] sm:$0xff]
    %v1139 = vld [vmem:[#allocation6 + $0x170] sm:$0xff]
    %v1140 = vld [vmem:[#allocation6 + $0x178] sm:$0xff]
    %v1141 = vld [vmem:[%s6] sm:$0x3]
    %v1143 = vlaneseq
    %v1144 = vshrl.u32 %v1143, 7
    %v1145 = vsub.s32 0, %v1144
    %v1146 = vrot.slane %v1141, %v1145
    %v1147 = vlaneseq
    %v1148 = vshrl.u32 %v1147, 7
    %v1149 = vsub.s32 1, %v1148
    %v1150 = vrot.slane %v1141, %v1149
    %v1201 = vunpack.c.l.b16 %v1093
    %v1202 = vunpack.c.h.b16 %v1093
    %v1203 = vunpack.c.l.b16 %v1094
    %v1204 = vunpack.c.h.b16 %v1094
    %v1205 = vunpack.c.l.b16 %v1095
    %v1206 = vunpack.c.h.b16 %v1095
    %v1207 = vunpack.c.l.b16 %v1096
    %v1208 = vunpack.c.h.b16 %v1096
    %v1209 = vunpack.c.l.b16 %v1097
    %v1210 = vunpack.c.h.b16 %v1097
    %v1211 = vunpack.c.l.b16 %v1098
    %v1212 = vunpack.c.h.b16 %v1098
    %v1213 = vunpack.c.l.b16 %v1099
    %v1214 = vunpack.c.h.b16 %v1099
    %v1215 = vunpack.c.l.b16 %v1100
    %v1216 = vunpack.c.h.b16 %v1100
    %v1217 = vunpack.c.l.b16 %v1101
    %v1218 = vunpack.c.h.b16 %v1101
    %v1219 = vunpack.c.l.b16 %v1102
    %v1220 = vunpack.c.h.b16 %v1102
    %v1221 = vunpack.c.l.b16 %v1103
    %v1222 = vunpack.c.h.b16 %v1103
    %v1223 = vunpack.c.l.b16 %v1104
    %v1224 = vunpack.c.h.b16 %v1104
    %v1225 = vunpack.c.l.b16 %v1105
    %v1226 = vunpack.c.h.b16 %v1105
    %v1227 = vunpack.c.l.b16 %v1106
    %v1228 = vunpack.c.h.b16 %v1106
    %v1229 = vunpack.c.l.b16 %v1107
    %v1230 = vunpack.c.h.b16 %v1107
    %v1231 = vunpack.c.l.b16 %v1108
    %v1232 = vunpack.c.h.b16 %v1108
    %v1233 = vunpack.c.l.b16 %v1109
    %v1234 = vunpack.c.h.b16 %v1109
    %v1235 = vunpack.c.l.b16 %v1110
    %v1236 = vunpack.c.h.b16 %v1110
    %v1237 = vunpack.c.l.b16 %v1111
    %v1238 = vunpack.c.h.b16 %v1111
    %v1239 = vunpack.c.l.b16 %v1112
    %v1240 = vunpack.c.h.b16 %v1112
    %v1241 = vunpack.c.l.b16 %v1113
    %v1242 = vunpack.c.h.b16 %v1113
    %v1243 = vunpack.c.l.b16 %v1114
    %v1244 = vunpack.c.h.b16 %v1114
    %v1245 = vunpack.c.l.b16 %v1115
    %v1246 = vunpack.c.h.b16 %v1115
    %v1247 = vunpack.c.l.b16 %v1116
    %v1248 = vunpack.c.h.b16 %v1116
    %v1249 = vunpack.c.l.b16 %v1117
    %v1250 = vunpack.c.h.b16 %v1117
    %v1251 = vunpack.c.l.b16 %v1118
    %v1252 = vunpack.c.h.b16 %v1118
    %v1253 = vunpack.c.l.b16 %v1119
    %v1254 = vunpack.c.h.b16 %v1119
    %v1255 = vunpack.c.l.b16 %v1120
    %v1256 = vunpack.c.h.b16 %v1120
    %v1257 = vunpack.c.l.b16 %v1121
    %v1258 = vunpack.c.h.b16 %v1121
    %v1259 = vunpack.c.l.b16 %v1122
    %v1260 = vunpack.c.h.b16 %v1122
    %v1261 = vunpack.c.l.b16 %v1123
    %v1262 = vunpack.c.h.b16 %v1123
    %v1263 = vunpack.c.l.b16 %v1124
    %v1264 = vunpack.c.h.b16 %v1124
    %v1265 = vunpack.c.l.b16 %v1125
    %v1266 = vunpack.c.h.b16 %v1125
    %v1267 = vunpack.c.l.b16 %v1126
    %v1268 = vunpack.c.h.b16 %v1126
    %v1269 = vunpack.c.l.b16 %v1127
    %v1270 = vunpack.c.h.b16 %v1127
    %v1271 = vunpack.c.l.b16 %v1128
    %v1272 = vunpack.c.h.b16 %v1128
    %v1273 = vunpack.c.l.b16 %v1129
    %v1274 = vunpack.c.h.b16 %v1129
    %v1275 = vunpack.c.l.b16 %v1130
    %v1276 = vunpack.c.h.b16 %v1130
    %v1277 = vunpack.c.l.b16 %v1131
    %v1278 = vunpack.c.h.b16 %v1131
    %v1279 = vunpack.c.l.b16 %v1132
    %v1280 = vunpack.c.h.b16 %v1132
    %v1281 = vunpack.c.l.b16 %v1133
    %v1282 = vunpack.c.h.b16 %v1133
    %v1283 = vunpack.c.l.b16 %v1134
    %v1284 = vunpack.c.h.b16 %v1134
    %v1285 = vunpack.c.l.b16 %v1135
    %v1286 = vunpack.c.h.b16 %v1135
    %v1287 = vunpack.c.l.b16 %v1136
    %v1288 = vunpack.c.h.b16 %v1136
    %v1289 = vunpack.c.l.b16 %v1137
    %v1290 = vunpack.c.h.b16 %v1137
    %v1291 = vunpack.c.l.b16 %v1138
    %v1292 = vunpack.c.h.b16 %v1138
    %v1293 = vunpack.c.l.b16 %v1139
    %v1294 = vunpack.c.h.b16 %v1139
    %v1295 = vunpack.c.l.b16 %v1140
    %v1296 = vunpack.c.h.b16 %v1140
    %v1297 = vpack.c.b16 %v1203, %v1201
    %v1298 = vpack.c.b16 %v1204, %v1202
    %v1299 = vpack.c.b16 %v1207, %v1205
    %v1300 = vpack.c.b16 %v1208, %v1206
    %v1301 = vpack.c.b16 %v1211, %v1209
    %v1302 = vpack.c.b16 %v1212, %v1210
    %v1303 = vpack.c.b16 %v1215, %v1213
    %v1304 = vpack.c.b16 %v1216, %v1214
    %v1305 = vpack.c.b16 %v1219, %v1217
    %v1306 = vpack.c.b16 %v1220, %v1218
    %v1307 = vpack.c.b16 %v1223, %v1221
    %v1308 = vpack.c.b16 %v1224, %v1222
    %v1309 = vpack.c.b16 %v1227, %v1225
    %v1310 = vpack.c.b16 %v1228, %v1226
    %v1311 = vpack.c.b16 %v1231, %v1229
    %v1312 = vpack.c.b16 %v1232, %v1230
    %v1313 = vpack.c.b16 %v1235, %v1233
    %v1314 = vpack.c.b16 %v1236, %v1234
    %v1315 = vpack.c.b16 %v1239, %v1237
    %v1316 = vpack.c.b16 %v1240, %v1238
    %v1317 = vpack.c.b16 %v1243, %v1241
    %v1318 = vpack.c.b16 %v1244, %v1242
    %v1319 = vpack.c.b16 %v1247, %v1245
    %v1320 = vpack.c.b16 %v1248, %v1246
    %v1321 = vpack.c.b16 %v1251, %v1249
    %v1322 = vpack.c.b16 %v1252, %v1250
    %v1323 = vpack.c.b16 %v1255, %v1253
    %v1324 = vpack.c.b16 %v1256, %v1254
    %v1325 = vpack.c.b16 %v1259, %v1257
    %v1326 = vpack.c.b16 %v1260, %v1258
    %v1327 = vpack.c.b16 %v1263, %v1261
    %v1328 = vpack.c.b16 %v1264, %v1262
    %v1329 = vpack.c.b16 %v1267, %v1265
    %v1330 = vpack.c.b16 %v1268, %v1266
    %v1331 = vpack.c.b16 %v1271, %v1269
    %v1332 = vpack.c.b16 %v1272, %v1270
    %v1333 = vpack.c.b16 %v1275, %v1273
    %v1334 = vpack.c.b16 %v1276, %v1274
    %v1335 = vpack.c.b16 %v1279, %v1277
    %v1336 = vpack.c.b16 %v1280, %v1278
    %v1337 = vpack.c.b16 %v1283, %v1281
    %v1338 = vpack.c.b16 %v1284, %v1282
    %v1339 = vpack.c.b16 %v1287, %v1285
    %v1340 = vpack.c.b16 %v1288, %v1286
    %v1341 = vpack.c.b16 %v1291, %v1289
    %v1342 = vpack.c.b16 %v1292, %v1290
    %v1343 = vpack.c.b16 %v1295, %v1293
    %v1344 = vpack.c.b16 %v1296, %v1294
    %1393 = vmatprep.subr.bf16.mxu0 %v1298
    %1394 = vmatpush1.bf16.msra.mxu0 %v1297
    %1395 = vmatprep.subr.bf16.mxu0 %v1300
    %1396 = vmatpush1.bf16.msra.mxu0 %v1299
    %1397 = vmatprep.subr.bf16.mxu0 %v1302
    %1398 = vmatpush1.bf16.msra.mxu0 %v1301
    %1399 = vmatprep.subr.bf16.mxu0 %v1304
    %1400 = vmatpush1.bf16.msra.mxu0 %v1303
    %1401 = vmatprep.subr.bf16.mxu0 %v1306
    %1402 = vmatpush1.bf16.msra.mxu0 %v1305
    %1403 = vmatprep.subr.bf16.mxu0 %v1308
    %1404 = vmatpush1.bf16.msra.mxu0 %v1307
    %1405 = vmatprep.subr.bf16.mxu0 %v1310
    %1406 = vmatpush1.bf16.msra.mxu0 %v1309
    %1407 = vmatprep.subr.bf16.mxu0 %v1312
    %1408 = vmatpush1.bf16.msra.mxu0 %v1311
    %1409 = vmatprep.subr.bf16.mxu0 %v1314
    %1410 = vmatpush1.bf16.msra.mxu0 %v1313
    %1411 = vmatprep.subr.bf16.mxu0 %v1316
    %1412 = vmatpush1.bf16.msra.mxu0 %v1315
    %1413 = vmatprep.subr.bf16.mxu0 %v1318
    %1414 = vmatpush1.bf16.msra.mxu0 %v1317
    %1415 = vmatprep.subr.bf16.mxu0 %v1320
    %1416 = vmatpush1.bf16.msra.mxu0 %v1319
    %1417 = vmatprep.subr.bf16.mxu0 %v1322
    %1418 = vmatpush1.bf16.msra.mxu0 %v1321
    %1419 = vmatprep.subr.bf16.mxu0 %v1324
    %1420 = vmatpush1.bf16.msra.mxu0 %v1323
    %1421 = vmatprep.subr.bf16.mxu0 %v1326
    %1422 = vmatpush1.bf16.msra.mxu0 %v1325
    %1423 = vmatprep.subr.bf16.mxu0 %v1328
    %1424 = vmatpush1.bf16.msra.mxu0 %v1327
    %1425 = vmatprep.mubr.bf16.mxu0 %v1091
    %1426 = vmatmul.mubr.bf16.gmra.mrb[0].mxu0 %v1090
    %v1427 = vpop.f32.mrb[0].mxu0
    %v1428 = vadd.f32 %v1146, %v1427
    %v1429 = vpop.f32.mrb[0].mxu0
    %v1430 = vadd.f32 %v1150, %v1429
    %v1431 = vpop.f32.mrb[0].mxu0
    %v1432 = vpop.f32.mrb[0].mxu0
    %1433 = vdwg.mxu0
    %1434 = vmatprep.subr.bf16.mxu0 %v1330
    %1435 = vmatpush1.bf16.msra.mxu0 %v1329
    %1436 = vmatprep.subr.bf16.mxu0 %v1332
    %1437 = vmatpush1.bf16.msra.mxu0 %v1331
    %1438 = vmatprep.subr.bf16.mxu0 %v1334
    %1439 = vmatpush1.bf16.msra.mxu0 %v1333
    %1440 = vmatprep.subr.bf16.mxu0 %v1336
    %1441 = vmatpush1.bf16.msra.mxu0 %v1335
    %1442 = vmatprep.subr.bf16.mxu0 %v1338
    %1443 = vmatpush1.bf16.msra.mxu0 %v1337
    %1444 = vmatprep.subr.bf16.mxu0 %v1340
    %1445 = vmatpush1.bf16.msra.mxu0 %v1339
    %1446 = vmatprep.subr.bf16.mxu0 %v1342
    %1447 = vmatpush1.bf16.msra.mxu0 %v1341
    %1448 = vmatprep.subr.bf16.mxu0 %v1344
    %1449 = vmatpush1.bf16.msra.mxu0 %v1343
    %1450 = vmatprep.subr.bf16.mxu0 0
    %1451 = vmatpush1.bf16.msra.mxu0 0
    %1452 = vmatprep.subr.bf16.mxu0 0
    %1453 = vmatpush1.bf16.msra.mxu0 0
    %1454 = vmatprep.subr.bf16.mxu0 0
    %1455 = vmatpush1.bf16.msra.mxu0 0
    %1456 = vmatprep.subr.bf16.mxu0 0
    %1457 = vmatpush1.bf16.msra.mxu0 0
    %1458 = vmatprep.subr.bf16.mxu0 0
    %1459 = vmatpush1.bf16.msra.mxu0 0
    %1460 = vmatprep.subr.bf16.mxu0 0
    %1461 = vmatpush1.bf16.msra.mxu0 0
    %1462 = vmatprep.subr.bf16.mxu0 0
    %1463 = vmatpush1.bf16.msra.mxu0 0
    %1464 = vmatprep.subr.bf16.mxu0 0
    %1465 = vmatpush1.bf16.msra.mxu0 0
    %1466 = vmatprep.mubr.bf16.mxu0 0
    %1467 = vmatmul.mubr.bf16.gmra.mrb[0].mxu0 %v1092
    %v1468 = vpop.f32.mrb[0].mxu0
    %v1469 = vadd.f32 %v1428, %v1468
    %v1470 = vpop.f32.mrb[0].mxu0
    %v1471 = vadd.f32 %v1430, %v1470
    %v1472 = vpop.f32.mrb[0].mxu0
    %v1473 = vpop.f32.mrb[0].mxu0
    %1474 = vdwg.mxu0
    %v1475 = vmax.f32 %v1469, 0.0
    %v1476 = vmax.f32 %v1471, 0.0
    %v1477 = vpack.c.bf16 %v1475, %v1475
    %v1478 = vpack.c.bf16 %v1476, %v1476
    %v1479 = vld [vmem:[#allocation7] sm:$0xf]
    %v1480 = vld [vmem:[#allocation7 + $0x4] sm:$0xf]
    %v1481 = vld [vmem:[#allocation7 + $0x8] sm:$0xf]
    %v1482 = vld [vmem:[#allocation7 + $0xc] sm:$0xf]
    %v1483 = vld [vmem:[#allocation7 + $0x10] sm:$0xf]
    %v1484 = vld [vmem:[#allocation7 + $0x14] sm:$0xf]
    %v1485 = vld [vmem:[#allocation7 + $0x18] sm:$0xf]
    %v1486 = vld [vmem:[#allocation7 + $0x1c] sm:$0xf]
    %v1487 = vld [vmem:[#allocation7 + $0x20] sm:$0xf]
    %v1488 = vld [vmem:[#allocation7 + $0x24] sm:$0xf]
    %v1489 = vld [vmem:[#allocation7 + $0x28] sm:$0xf]
    %v1490 = vld [vmem:[#allocation7 + $0x2c] sm:$0xf]
    %v1491 = vld [vmem:[#allocation7 + $0x30] sm:$0xf]
    %v1492 = vld [vmem:[#allocation7 + $0x34] sm:$0xf]
    %v1493 = vld [vmem:[#allocation7 + $0x38] sm:$0xf]
    %v1494 = vld [vmem:[#allocation7 + $0x3c] sm:$0xf]
    %v1495 = vld [vmem:[#allocation7 + $0x40] sm:$0xf]
    %v1496 = vld [vmem:[#allocation7 + $0x44] sm:$0xf]
    %v1497 = vld [vmem:[#allocation7 + $0x48] sm:$0xf]
    %v1498 = vld [vmem:[#allocation7 + $0x4c] sm:$0xf]
    %v1499 = vld [vmem:[#allocation7 + $0x50] sm:$0xf]
    %v1500 = vld [vmem:[#allocation7 + $0x54] sm:$0xf]
    %v1501 = vld [vmem:[#allocation7 + $0x58] sm:$0xf]
    %v1502 = vld [vmem:[#allocation7 + $0x5c] sm:$0xf]
    %v1503 = vld [vmem:[#allocation7 + $0x60] sm:$0xf]
    %v1504 = vld [vmem:[#allocation7 + $0x64] sm:$0xf]
    %v1505 = vld [vmem:[#allocation7 + $0x68] sm:$0xf]
    %v1506 = vld [vmem:[#allocation7 + $0x6c] sm:$0xf]
    %v1507 = vld [vmem:[#allocation7 + $0x70] sm:$0xf]
    %v1508 = vld [vmem:[#allocation7 + $0x74] sm:$0xf]
    %v1509 = vld [vmem:[#allocation7 + $0x78] sm:$0xf]
    %v1510 = vld [vmem:[#allocation7 + $0x7c] sm:$0xf]
    %v1511 = vld [vmem:[%s8] sm:$0x1]
    %v1513 = vlaneseq
    %v1514 = vshrl.u32 %v1513, 7
    %v1515 = vsub.s32 0, %v1514
    %v1516 = vrot.slane %v1511, %v1515
    %v1550 = vunpack.c.l.b16 %v1479
    %v1551 = vunpack.c.l.b16 %v1480
    %v1552 = vunpack.c.l.b16 %v1481
    %v1553 = vunpack.c.l.b16 %v1482
    %v1554 = vunpack.c.l.b16 %v1483
    %v1555 = vunpack.c.l.b16 %v1484
    %v1556 = vunpack.c.l.b16 %v1485
    %v1557 = vunpack.c.l.b16 %v1486
    %v1558 = vunpack.c.l.b16 %v1487
    %v1559 = vunpack.c.l.b16 %v1488
    %v1560 = vunpack.c.l.b16 %v1489
    %v1561 = vunpack.c.l.b16 %v1490
    %v1562 = vunpack.c.l.b16 %v1491
    %v1563 = vunpack.c.l.b16 %v1492
    %v1564 = vunpack.c.l.b16 %v1493
    %v1565 = vunpack.c.l.b16 %v1494
    %v1566 = vunpack.c.l.b16 %v1495
    %v1567 = vunpack.c.l.b16 %v1496
    %v1568 = vunpack.c.l.b16 %v1497
    %v1569 = vunpack.c.l.b16 %v1498
    %v1570 = vunpack.c.l.b16 %v1499
    %v1571 = vunpack.c.l.b16 %v1500
    %v1572 = vunpack.c.l.b16 %v1501
    %v1573 = vunpack.c.l.b16 %v1502
    %v1574 = vunpack.c.l.b16 %v1503
    %v1575 = vunpack.c.l.b16 %v1504
    %v1576 = vunpack.c.l.b16 %v1505
    %v1577 = vunpack.c.l.b16 %v1506
    %v1578 = vunpack.c.l.b16 %v1507
    %v1579 = vunpack.c.l.b16 %v1508
    %v1580 = vunpack.c.l.b16 %v1509
    %v1581 = vunpack.c.l.b16 %v1510
    %v1582 = vpack.c.b16 %v1551, %v1550
    %v1583 = vpack.c.b16 %v1553, %v1552
    %v1584 = vpack.c.b16 %v1555, %v1554
    %v1585 = vpack.c.b16 %v1557, %v1556
    %v1586 = vpack.c.b16 %v1559, %v1558
    %v1587 = vpack.c.b16 %v1561, %v1560
    %v1588 = vpack.c.b16 %v1563, %v1562
    %v1589 = vpack.c.b16 %v1565, %v1564
    %v1590 = vpack.c.b16 %v1567, %v1566
    %v1591 = vpack.c.b16 %v1569, %v1568
    %v1592 = vpack.c.b16 %v1571, %v1570
    %v1593 = vpack.c.b16 %v1573, %v1572
    %v1594 = vpack.c.b16 %v1575, %v1574
    %v1595 = vpack.c.b16 %v1577, %v1576
    %v1596 = vpack.c.b16 %v1579, %v1578
    %v1597 = vpack.c.b16 %v1581, %v1580
    %1614 = vmatprep.subr.bf16.mxu0 0
    %1615 = vmatpush1.bf16.msra.mxu0 %v1582
    %1616 = vmatprep.subr.bf16.mxu0 0
    %1617 = vmatpush1.bf16.msra.mxu0 %v1583
    %1618 = vmatprep.subr.bf16.mxu0 0
    %1619 = vmatpush1.bf16.msra.mxu0 %v1584
    %1620 = vmatprep.subr.bf16.mxu0 0
    %1621 = vmatpush1.bf16.msra.mxu0 %v1585
    %1622 = vmatprep.subr.bf16.mxu0 0
    %1623 = vmatpush1.bf16.msra.mxu0 %v1586
    %1624 = vmatprep.subr.bf16.mxu0 0
    %1625 = vmatpush1.bf16.msra.mxu0 %v1587
    %1626 = vmatprep.subr.bf16.mxu0 0
    %1627 = vmatpush1.bf16.msra.mxu0 %v1588
    %1628 = vmatprep.subr.bf16.mxu0 0
    %1629 = vmatpush1.bf16.msra.mxu0 %v1589
    %1630 = vmatprep.subr.bf16.mxu0 0
    %1631 = vmatpush1.bf16.msra.mxu0 %v1590
    %1632 = vmatprep.subr.bf16.mxu0 0
    %1633 = vmatpush1.bf16.msra.mxu0 %v1591
    %1634 = vmatprep.subr.bf16.mxu0 0
    %1635 = vmatpush1.bf16.msra.mxu0 %v1592
    %1636 = vmatprep.subr.bf16.mxu0 0
    %1637 = vmatpush1.bf16.msra.mxu0 %v1593
    %1638 = vmatprep.subr.bf16.mxu0 0
    %1639 = vmatpush1.bf16.msra.mxu0 %v1594
    %1640 = vmatprep.subr.bf16.mxu0 0
    %1641 = vmatpush1.bf16.msra.mxu0 %v1595
    %1642 = vmatprep.subr.bf16.mxu0 0
    %1643 = vmatpush1.bf16.msra.mxu0 %v1596
    %1644 = vmatprep.subr.bf16.mxu0 0
    %1645 = vmatpush1.bf16.msra.mxu0 %v1597
    %1646 = vmatprep.mubr.bf16.mxu0 %v1478
    %1647 = vmatmul.mubr.bf16.gmra.mrb[0].mxu0 %v1477
    %v1648 = vpop.f32.mrb[0].mxu0
    %v1649 = vadd.f32 %v1516, %v1648
    %v1650 = vpop.f32.mrb[0].mxu0
    %v1651 = vpop.f32.mrb[0].mxu0
    %v1652 = vpop.f32.mrb[0].mxu0
    %1653 = vdwg.mxu0
    %v1654 = vmax.f32 %v1649, 0.0
    %v1655 = vpack.c.bf16 %v1654, %v1654
    %v1656 = vld [vmem:[#allocation9] sm:$0xf]
    %v1657 = vld [vmem:[#allocation9 + $0x4] sm:$0xf]
    %v1658 = vld [vmem:[#allocation9 + $0x8] sm:$0xf]
    %v1659 = vld [vmem:[#allocation9 + $0xc] sm:$0xf]
    %v1660 = vld [vmem:[#allocation9 + $0x10] sm:$0xf]
    %v1661 = vld [vmem:[#allocation9 + $0x14] sm:$0xf]
    %v1662 = vld [vmem:[#allocation9 + $0x18] sm:$0xf]
    %v1663 = vld [vmem:[#allocation9 + $0x1c] sm:$0xf]
    %v1664 = vld [vmem:[#allocation9 + $0x20] sm:$0xf]
    %v1665 = vld [vmem:[#allocation9 + $0x24] sm:$0xf]
    %v1666 = vld [vmem:[#allocation9 + $0x28] sm:$0xf]
    %v1667 = vld [vmem:[#allocation9 + $0x2c] sm:$0xf]
    %v1668 = vld [vmem:[#allocation9 + $0x30] sm:$0xf]
    %v1669 = vld [vmem:[#allocation9 + $0x34] sm:$0xf]
    %v1670 = vld [vmem:[#allocation9 + $0x38] sm:$0xf]
    %v1671 = vld [vmem:[#allocation9 + $0x3c] sm:$0xf]
    %v1672 = vld [vmem:[%s10] sm:$0x1]
    %v1674 = vlaneseq
    %v1675 = vshrl.u32 %v1674, 7
    %v1676 = vsub.s32 0, %v1675
    %v1677 = vrot.slane %v1672, %v1676
    %v1695 = vunpack.c.l.b16 %v1656
    %v1696 = vunpack.c.l.b16 %v1657
    %v1697 = vunpack.c.l.b16 %v1658
    %v1698 = vunpack.c.l.b16 %v1659
    %v1699 = vunpack.c.l.b16 %v1660
    %v1700 = vunpack.c.l.b16 %v1661
    %v1701 = vunpack.c.l.b16 %v1662
    %v1702 = vunpack.c.l.b16 %v1663
    %v1703 = vunpack.c.l.b16 %v1664
    %v1704 = vunpack.c.l.b16 %v1665
    %v1705 = vunpack.c.l.b16 %v1666
    %v1706 = vunpack.c.l.b16 %v1667
    %v1707 = vunpack.c.l.b16 %v1668
    %v1708 = vunpack.c.l.b16 %v1669
    %v1709 = vunpack.c.l.b16 %v1670
    %v1710 = vunpack.c.l.b16 %v1671
    %v1711 = vpack.c.b16 %v1696, %v1695
    %v1712 = vpack.c.b16 %v1698, %v1697
    %v1713 = vpack.c.b16 %v1700, %v1699
    %v1714 = vpack.c.b16 %v1702, %v1701
    %v1715 = vpack.c.b16 %v1704, %v1703
    %v1716 = vpack.c.b16 %v1706, %v1705
    %v1717 = vpack.c.b16 %v1708, %v1707
    %v1718 = vpack.c.b16 %v1710, %v1709
    %1727 = vmatprep.subr.bf16.mxu0 0
    %1728 = vmatpush1.bf16.msra.mxu0 %v1711
    %1729 = vmatprep.subr.bf16.mxu0 0
    %1730 = vmatpush1.bf16.msra.mxu0 %v1712
    %1731 = vmatprep.subr.bf16.mxu0 0
    %1732 = vmatpush1.bf16.msra.mxu0 %v1713
    %1733 = vmatprep.subr.bf16.mxu0 0
    %1734 = vmatpush1.bf16.msra.mxu0 %v1714
    %1735 = vmatprep.subr.bf16.mxu0 0
    %1736 = vmatpush1.bf16.msra.mxu0 %v1715
    %1737 = vmatprep.subr.bf16.mxu0 0
    %1738 = vmatpush1.bf16.msra.mxu0 %v1716
    %1739 = vmatprep.subr.bf16.mxu0 0
    %1740 = vmatpush1.bf16.msra.mxu0 %v1717
    %1741 = vmatprep.subr.bf16.mxu0 0
    %1742 = vmatpush1.bf16.msra.mxu0 %v1718
    %1743 = vmatprep.subr.bf16.mxu0 0
    %1744 = vmatpush1.bf16.msra.mxu0 0
    %1745 = vmatprep.subr.bf16.mxu0 0
    %1746 = vmatpush1.bf16.msra.mxu0 0
    %1747 = vmatprep.subr.bf16.mxu0 0
    %1748 = vmatpush1.bf16.msra.mxu0 0
    %1749 = vmatprep.subr.bf16.mxu0 0
    %1750 = vmatpush1.bf16.msra.mxu0 0
    %1751 = vmatprep.subr.bf16.mxu0 0
    %1752 = vmatpush1.bf16.msra.mxu0 0
    %1753 = vmatprep.subr.bf16.mxu0 0
    %1754 = vmatpush1.bf16.msra.mxu0 0
    %1755 = vmatprep.subr.bf16.mxu0 0
    %1756 = vmatpush1.bf16.msra.mxu0 0
    %1757 = vmatprep.subr.bf16.mxu0 0
    %1758 = vmatpush1.bf16.msra.mxu0 0
    %1759 = vmatprep.mubr.bf16.mxu0 0
    %1760 = vmatmul.mubr.bf16.gmra.mrb[0].mxu0 %v1655
    %v1761 = vpop.f32.mrb[0].mxu0
    %v1762 = vadd.f32 %v1677, %v1761
    %v1763 = vpop.f32.mrb[0].mxu0
    %v1764 = vpop.f32.mrb[0].mxu0
    %v1765 = vpop.f32.mrb[0].mxu0
    %1766 = vdwg.mxu0
    %v1767 = vmax.f32 %v1762, 0.0
    %v1768 = vpack.c.bf16 %v1767, %v1767
    %v1769 = vld [vmem:[#allocation10] sm:$0xf]
    %v1770 = vld [vmem:[#allocation10 + $0x4] sm:$0xf]
    %v1771 = vld [vmem:[#allocation10 + $0x8] sm:$0xf]
    %v1772 = vld [vmem:[#allocation10 + $0xc] sm:$0xf]
    %v1773 = vld [vmem:[#allocation10 + $0x10] sm:$0xf]
    %v1774 = vld [vmem:[#allocation10 + $0x14] sm:$0xf]
    %v1775 = vld [vmem:[#allocation10 + $0x18] sm:$0xf]
    %v1776 = vld [vmem:[#allocation10 + $0x1c] sm:$0xf]
    %v1777 = vld [vmem:[#allocation10 + $0x20] sm:$0xf]
    %v1778 = vld [vmem:[#allocation10 + $0x24] sm:$0xf]
    %v1779 = vld [vmem:[#allocation10 + $0x28] sm:$0xf]
    %v1780 = vld [vmem:[#allocation10 + $0x2c] sm:$0xf]
    %v1781 = vld [vmem:[#allocation10 + $0x30] sm:$0xf]
    %v1782 = vld [vmem:[#allocation10 + $0x34] sm:$0xf]
    %v1783 = vld [vmem:[#allocation10 + $0x38] sm:$0xf]
    %v1784 = vld [vmem:[#allocation10 + $0x3c] sm:$0xf]
    %v1785 = vld [vmem:[%s12] sm:$0x1]
    %v1787 = vlaneseq
    %v1788 = vshrl.u32 %v1787, 7
    %v1789 = vsub.s32 0, %v1788
    %v1790 = vrot.slane %v1785, %v1789
    %v1808 = vunpack.c.l.b16 %v1769
    %v1809 = vunpack.c.l.b16 %v1770
    %v1810 = vunpack.c.l.b16 %v1771
    %v1811 = vunpack.c.l.b16 %v1772
    %v1812 = vunpack.c.l.b16 %v1773
    %v1813 = vunpack.c.l.b16 %v1774
    %v1814 = vunpack.c.l.b16 %v1775
    %v1815 = vunpack.c.l.b16 %v1776
    %v1816 = vunpack.c.l.b16 %v1777
    %v1817 = vunpack.c.l.b16 %v1778
    %v1818 = vunpack.c.l.b16 %v1779
    %v1819 = vunpack.c.l.b16 %v1780
    %v1820 = vunpack.c.l.b16 %v1781
    %v1821 = vunpack.c.l.b16 %v1782
    %v1822 = vunpack.c.l.b16 %v1783
    %v1823 = vunpack.c.l.b16 %v1784
    %v1824 = vpack.c.b16 %v1809, %v1808
    %v1825 = vpack.c.b16 %v1811, %v1810
    %v1826 = vpack.c.b16 %v1813, %v1812
    %v1827 = vpack.c.b16 %v1815, %v1814
    %v1828 = vpack.c.b16 %v1817, %v1816
    %v1829 = vpack.c.b16 %v1819, %v1818
    %v1830 = vpack.c.b16 %v1821, %v1820
    %v1831 = vpack.c.b16 %v1823, %v1822
    %1840 = vmatprep.subr.bf16.mxu0 0
    %1841 = vmatpush1.bf16.msra.mxu0 %v1824
    %1842 = vmatprep.subr.bf16.mxu0 0
    %1843 = vmatpush1.bf16.msra.mxu0 %v1825
    %1844 = vmatprep.subr.bf16.mxu0 0
    %1845 = vmatpush1.bf16.msra.mxu0 %v1826
    %1846 = vmatprep.subr.bf16.mxu0 0
    %1847 = vmatpush1.bf16.msra.mxu0 %v1827
    %1848 = vmatprep.subr.bf16.mxu0 0
    %1849 = vmatpush1.bf16.msra.mxu0 %v1828
    %1850 = vmatprep.subr.bf16.mxu0 0
    %1851 = vmatpush1.bf16.msra.mxu0 %v1829
    %1852 = vmatprep.subr.bf16.mxu0 0
    %1853 = vmatpush1.bf16.msra.mxu0 %v1830
    %1854 = vmatprep.subr.bf16.mxu0 0
    %1855 = vmatpush1.bf16.msra.mxu0 %v1831
    %1856 = vmatprep.subr.bf16.mxu0 0
    %1857 = vmatpush1.bf16.msra.mxu0 0
    %1858 = vmatprep.subr.bf16.mxu0 0
    %1859 = vmatpush1.bf16.msra.mxu0 0
    %1860 = vmatprep.subr.bf16.mxu0 0
    %1861 = vmatpush1.bf16.msra.mxu0 0
    %1862 = vmatprep.subr.bf16.mxu0 0
    %1863 = vmatpush1.bf16.msra.mxu0 0
    %1864 = vmatprep.subr.bf16.mxu0 0
    %1865 = vmatpush1.bf16.msra.mxu0 0
    %1866 = vmatprep.subr.bf16.mxu0 0
    %1867 = vmatpush1.bf16.msra.mxu0 0
    %1868 = vmatprep.subr.bf16.mxu0 0
    %1869 = vmatpush1.bf16.msra.mxu0 0
    %1870 = vmatprep.subr.bf16.mxu0 0
    %1871 = vmatpush1.bf16.msra.mxu0 0
    %1872 = vmatprep.mubr.bf16.mxu0 0
    %1873 = vmatmul.mubr.bf16.gmra.mrb[0].mxu0 %v1768
    %v1874 = vpop.f32.mrb[0].mxu0
    %v1875 = vadd.f32 %v1790, %v1874
    %v1876 = vpop.f32.mrb[0].mxu0
    %v1877 = vpop.f32.mrb[0].mxu0
    %v1878 = vpop.f32.mrb[0].mxu0
    %1879 = vdwg.mxu0
    %v1880 = vpack.c.bf16 %v1875, %v1875
    %1881 = vst [vmem:[%s13] sm:$0xf] %v1880
    // Predicated region
    $region78: #{iknet_forward.1} parent=1 // pred_check
      _
    $region79: #{iknet_forward.1} parent=1 // pred_check_branch
      %1883 = sbr.rel (0) target = $region81
    $region80: #{iknet_forward.1} parent=1 // pred_region
      _
    $region81: #{iknet_forward.1} parent=1 // pred_fallthru
      _
    // Predicated region
    $region82: #{iknet_forward.1} parent=1 // pred_check
      _
    $region83: #{iknet_forward.1} parent=1 // pred_check_branch
      %1885 = sbr.rel (0) target = $region85
    $region84: #{iknet_forward.1} parent=1 // pred_region
      _
    $region85: #{iknet_forward.1} parent=1 // pred_fallthru
      _
    %1886 = vsyncpa [#allocation3], 1
    %1887 = vsyncpa [#allocation5], 1
    %1888 = vsyncpa [#allocation8], 1
    %1889 = vsyncpa [#allocation11], 1

</llo_original>
